<compile_context>
chip_gen: v7x
topology: tpu7x:2x2x1
jax: 0.10.0
libtpu: 0.0.40
codegen_flags: <defaults>
</compile_context>

<pallas_src>
import numpy as np
import jax
import jax.numpy as jnp
from jax import lax
from jax.experimental import pallas as pl
from jax.experimental.pallas import tpu as pltpu

# ---------------------------------------------------------------- constants
N = 2                        # batch
L_IN = 254                   # input length (stem outputs L1 = 128)
K1, STRIDE1, PAD1 = 5, 2, 3  # stem conv1d(1, 16, k=5, s=2, p=3)
C_STEM = 16
C_MID = 8
L1 = (L_IN + 2 * PAD1 - K1) // STRIDE1 + 1   # = 128
TOT = N * L1                                 # = 256 (batch folded into lanes)
POOL_OUT = 64
NUM_CLASSES = 3
BN_EPS = 1e-5
F32 = jnp.float32


def _mm(a, b):
    # default matmul precision (HIGHEST removed per review)
    return jnp.dot(a, b, preferred_element_type=F32)


# ---------------------------------------------------------------- fused kernel
def fused_resnet_kernel(patch_ref, w5_ref, c1b_ref, ml_ref, mr_ref,
                        w1a_ref, b1a_ref, w2a_ref, b2a_ref, w3a_ref, b3a_ref,
                        w1b_ref, b1b_ref, w2b_ref, b2b_ref, w3b_ref, b3b_ref,
                        wf_ref, fcb_ref, out_ref):
    """Whole net in one kernel; activations are (C, N*L1) with batch in lanes."""
    ml = ml_ref[...]          # (1, TOT): 0 at l==0 of each batch segment
    mr = mr_ref[...]          # (1, TOT): 0 at l==L1-1 of each batch segment

    def shift_pm(y):
        # y[:, l-1] / y[:, l+1] within each 128-lane batch segment (zero padded).
        prev = pltpu.roll(y, shift=1, axis=1) * ml        # wraps -> masked to 0
        nxt = pltpu.roll(y, shift=TOT - 1, axis=1) * mr   # roll by -1 (= TOT-1)
        return prev, nxt

    # ---- stem: conv1(k=5,s=2,p=3) (BN folded into weights) + ReLU + MaxPool(3,1,1)
    y = jnp.maximum(_mm(w5_ref[...], patch_ref[...]) + c1b_ref[...], 0.0)   # (16, TOT)
    prev, nxt = shift_pm(y)
    # zero edge-fill == -inf padding for maxpool because y >= 0 after ReLU
    x = jnp.maximum(jnp.maximum(prev, nxt), y)

    # ---- ResBlock(16 -> 8 -> 8(k=3,p=1) -> 16), identity shortcut, BN folded
    def resblock(x, w1_ref, b1_ref, w2_ref, b2_ref, w3_ref, b3_ref):
        h1 = jnp.maximum(_mm(w1_ref[...], x) + b1_ref[...], 0.0)            # (8, TOT)
        p, n = shift_pm(h1)
        c2 = _mm(w2_ref[0], p) + _mm(w2_ref[1], h1) + _mm(w2_ref[2], n)
        h2 = jnp.maximum(c2 + b2_ref[...], 0.0)                             # (8, TOT)
        h3 = _mm(w3_ref[...], h2) + b3_ref[...]                             # (16, TOT)
        return jnp.maximum(h3 + x, 0.0)

    x = resblock(x, w1a_ref, b1a_ref, w2a_ref, b2a_ref, w3a_ref, b3a_ref)
    x = resblock(x, w1b_ref, b1b_ref, w2b_ref, b2b_ref, w3b_ref, b3b_ref)

    # ---- head: AdaptiveAvgPool1d(64)+flatten+Linear(1024,3) folded into wf
    #      (3, 16, TOT); evaluated as f32 VPU multiply + reductions (no MXU).
    rows = [jnp.sum(x * wf_ref[k], axis=0, keepdims=True)       # (1, TOT) per class
            for k in range(NUM_CLASSES)]
    partial = jnp.concatenate(rows, axis=0)                     # (3, TOT)
    for b in range(N):                                          # N=2, unrolled
        logit = (jnp.sum(partial[:, b * L1:(b + 1) * L1], axis=1, keepdims=True)
                 + fcb_ref[...])                                # (3, 1)
        m = jnp.max(logit, axis=0, keepdims=True)
        lse = m + jnp.log(jnp.sum(jnp.exp(logit - m), axis=0, keepdims=True))
        out_ref[:, b:b + 1] = logit - lse                       # log-softmax


# ---------------------------------------------------------------- wrapper
def run_fused(kp, patches):
    blk_a, blk_b = kp["blocks"]
    out = pl.pallas_call(
        fused_resnet_kernel,
        out_shape=jax.ShapeDtypeStruct((NUM_CLASSES, N), F32),
    )(patches, kp["w5"], kp["c1b"], kp["mask_l"], kp["mask_r"],
      *blk_a, *blk_b, kp["wfold"], kp["fcb"])
    return out.T                                                 # (N, NUM_CLASSES)


@jax.jit
def resnet_forward(x, kp):
    # x: (N, 1, L_IN) float32, NCL.  im2col for the strided stem conv is done
    # as a tiny one-time XLA gather in glue; everything else is in the kernel.
    xpad = jnp.pad(x[:, 0, :], ((0, 0), (PAD1, PAD1)))                 # (N, L_IN+6)
    idx = STRIDE1 * np.arange(L1)[None, :] + np.arange(K1)[:, None]    # (K1, L1)
    patches = xpad[:, idx]                                             # (N, K1, L1)
    patches = jnp.transpose(patches, (1, 0, 2)).reshape(K1, TOT)       # (K1, N*L1)
    return run_fused(kp, patches)


# ---------------------------------------------------------------- parameters
def build_params():
    key = jax.random.PRNGKey(0)
    ks = iter(jax.random.split(key, 64))

    def nrm(shape, scale):
        return (scale * jax.random.normal(next(ks), shape)).astype(F32)

    def bn(c):
        g = (1.0 + 0.1 * jax.random.normal(next(ks), (c,))).astype(F32)
        b = (0.1 * jax.random.normal(next(ks), (c,))).astype(F32)
        m = (0.1 * jax.random.normal(next(ks), (c,))).astype(F32)
        v = (0.5 + jnp.abs(jax.random.normal(next(ks), (c,)))).astype(F32)
        return (g, b, m, v)

    raw = {
        "conv1_w": nrm((C_STEM, 1, K1), 0.3),
        "bn1": bn(C_STEM),
        "blocks": [],
        "fc_w": nrm((NUM_CLASSES, C_STEM * POOL_OUT), 0.05),
        "fc_b": nrm((NUM_CLASSES,), 0.05),
    }
    for _ in range(2):
        raw["blocks"].append({
            "w1": nrm((C_MID, C_STEM, 1), 0.2), "bn1": bn(C_MID),
            "w2": nrm((C_MID, C_MID, 3), 0.2), "bn2": bn(C_MID),
            "w3": nrm((C_STEM, C_MID, 1), 0.2), "bn3": bn(C_STEM),
        })

    def fold(p):  # eval-mode BN -> per-channel (scale, shift) column vectors
        g, b, m, v = p
        s = g / jnp.sqrt(v + BN_EPS)
        return s.reshape(-1, 1).astype(F32), (b - m * s).reshape(-1, 1).astype(F32)

    # seam masks for the in-segment +-1 shifts (zero wrapped / cross-batch lanes)
    mask_l = np.ones((1, TOT), np.float32)
    mask_r = np.ones((1, TOT), np.float32)
    for b in range(N):
        mask_l[0, b * L1] = 0.0              # no l-1 neighbour at l == 0
        mask_r[0, b * L1 + L1 - 1] = 0.0     # no l+1 neighbour at l == L1-1

    # AdaptiveAvgPool1d(64) as an (L1, 64) averaging matrix (general formula)
    P = np.zeros((L1, POOL_OUT), np.float32)
    for j in range(POOL_OUT):
        s = (j * L1) // POOL_OUT
        e = -((-(j + 1) * L1) // POOL_OUT)
        P[s:e, j] = 1.0 / (e - s)

    s_bn1, b_bn1 = fold(raw["bn1"])

    # fold avg-pool + flatten + fc into one (3, C, N*L1) weight:
    #   wfold[k, c, b*L1 + l] = sum_j P[l, j] * fc_w[k, c*64 + j]
    fc3 = np.asarray(raw["fc_w"]).reshape(NUM_CLASSES, C_STEM, POOL_OUT)
    wfold = np.einsum("lj,kcj->kcl", P, fc3).astype(np.float32)        # (3, 16, L1)
    wfold = np.concatenate([wfold] * N, axis=-1)                       # (3, 16, TOT)

    kp = {
        "w5": s_bn1 * raw["conv1_w"].reshape(C_STEM, K1),   # BN1 scale folded into conv1
        "c1b": b_bn1,
        "mask_l": jnp.asarray(mask_l), "mask_r": jnp.asarray(mask_r),
        "blocks": [],
        "wfold": jnp.asarray(wfold),
        "fcb": raw["fc_b"].reshape(NUM_CLASSES, 1),
    }
    for blk in raw["blocks"]:
        s1, b1 = fold(blk["bn1"])
        s2, b2 = fold(blk["bn2"])
        s3, b3 = fold(blk["bn3"])
        w1s = s1 * blk["w1"][:, :, 0]                                   # (8, 16)
        w2s = jnp.transpose(blk["w2"], (2, 0, 1)) * s2[None, :, :]      # (3, 8, 8)
        w3s = s3 * blk["w3"][:, :, 0]                                   # (16, 8)
        kp["blocks"].append((w1s, b1, w2s, b2, w3s, b3))
    return raw, kp


# ---------------------------------------------------------------- pure-JAX reference
def reference_forward(x, raw):
    HI = lax.Precision.HIGHEST

    def bnorm(h, p):
        g, b, m, v = p
        inv = 1.0 / jnp.sqrt(v + BN_EPS)
        return (h - m[None, :, None]) * inv[None, :, None] * g[None, :, None] + b[None, :, None]

    def conv1d(h, w, stride, padding):
        return lax.conv_general_dilated(h, w, (stride,), [(padding, padding)],
                                        dimension_numbers=("NCH", "OIH", "NCH"),
                                        precision=HI)

    h = jnp.maximum(bnorm(conv1d(x, raw["conv1_w"], STRIDE1, PAD1), raw["bn1"]), 0.0)
    hp = jnp.pad(h, ((0, 0), (0, 0), (1, 1)), constant_values=-jnp.inf)
    h = jnp.maximum(jnp.maximum(hp[:, :, :-2], hp[:, :, 1:-1]), hp[:, :, 2:])
    for blk in raw["blocks"]:
        idn = h
        t = jnp.maximum(bnorm(conv1d(h, blk["w1"], 1, 0), blk["bn1"]), 0.0)
        t = jnp.maximum(bnorm(conv1d(t, blk["w2"], 1, 1), blk["bn2"]), 0.0)
        t = bnorm(conv1d(t, blk["w3"], 1, 0), blk["bn3"])
        h = jnp.maximum(t + idn, 0.0)
    # AdaptiveAvgPool1d(64): L1 = 128 = 2*64, so windows are exact pairs
    h = h.reshape(N, C_STEM, POOL_OUT, -1).mean(axis=-1)
    f = h.reshape(N, C_STEM * POOL_OUT)
    logits = jnp.dot(f, raw["fc_w"].T, precision=HI) + raw["fc_b"]
    return jax.nn.log_softmax(logits, axis=1)


# ---------------------------------------------------------------- main
if __name__ == "__main__":
    raw, kp = build_params()
    x = jax.random.normal(jax.random.PRNGKey(0), (N, 1, L_IN), dtype=F32)

    out = jax.block_until_ready(resnet_forward(x, kp))
    assert out.shape == (N, NUM_CLASSES) and out.dtype == F32

    ref = reference_forward(x, raw)
    np.testing.assert_allclose(np.asarray(out), np.asarray(ref), rtol=3e-2, atol=3e-2)

    print("KERNEL_OK")
</pallas_src>

<mosaic_0001>
module attributes {stable_mosaic.version = 11 : i64} {
  func.func @fused_resnet_kernel(%arg0: memref<5x256xf32, #tpu.memory_space<vmem>>, %arg1: memref<16x5xf32, #tpu.memory_space<vmem>>, %arg2: memref<16x1xf32, #tpu.memory_space<vmem>>, %arg3: memref<1x256xf32, #tpu.memory_space<vmem>>, %arg4: memref<1x256xf32, #tpu.memory_space<vmem>>, %arg5: memref<8x16xf32, #tpu.memory_space<vmem>>, %arg6: memref<8x1xf32, #tpu.memory_space<vmem>>, %arg7: memref<3x8x8xf32, #tpu.memory_space<vmem>>, %arg8: memref<8x1xf32, #tpu.memory_space<vmem>>, %arg9: memref<16x8xf32, #tpu.memory_space<vmem>>, %arg10: memref<16x1xf32, #tpu.memory_space<vmem>>, %arg11: memref<8x16xf32, #tpu.memory_space<vmem>>, %arg12: memref<8x1xf32, #tpu.memory_space<vmem>>, %arg13: memref<3x8x8xf32, #tpu.memory_space<vmem>>, %arg14: memref<8x1xf32, #tpu.memory_space<vmem>>, %arg15: memref<16x8xf32, #tpu.memory_space<vmem>>, %arg16: memref<16x1xf32, #tpu.memory_space<vmem>>, %arg17: memref<3x16x256xf32, #tpu.memory_space<vmem>>, %arg18: memref<3x1xf32, #tpu.memory_space<vmem>>, %arg19: memref<3x2xf32, #tpu.memory_space<vmem>>) attributes {dimension_semantics = [], scalar_prefetch = 0 : i64, scratch_operands = 0 : i64, tpu.core_type = #tpu.core_type<tc>} {
    %c0 = arith.constant 0 : index
    %c0_0 = arith.constant 0 : index
    %0 = vector.load %arg3[%c0, %c0_0] : memref<1x256xf32, #tpu.memory_space<vmem>>, vector<1x256xf32>
    %c0_1 = arith.constant 0 : index
    %c0_2 = arith.constant 0 : index
    %1 = vector.load %arg4[%c0_1, %c0_2] : memref<1x256xf32, #tpu.memory_space<vmem>>, vector<1x256xf32>
    %c0_3 = arith.constant 0 : index
    %c0_4 = arith.constant 0 : index
    %2 = vector.load %arg1[%c0_3, %c0_4] : memref<16x5xf32, #tpu.memory_space<vmem>>, vector<16x5xf32>
    %c0_5 = arith.constant 0 : index
    %c0_6 = arith.constant 0 : index
    %3 = vector.load %arg0[%c0_5, %c0_6] : memref<5x256xf32, #tpu.memory_space<vmem>>, vector<5x256xf32>
    %cst = arith.constant dense<0.000000e+00> : vector<16x256xf32>
    %4 = tpu.matmul %2, %3, %cst {dimension_numbers = #tpu.dot_dimension_numbers<[1], [0], [0], [1], [0, 0, 1, 1], [], []>} : vector<16x5xf32>, vector<5x256xf32>, vector<16x256xf32> -> vector<16x256xf32>
    %c0_7 = arith.constant 0 : index
    %c0_8 = arith.constant 0 : index
    %5 = vector.load %arg2[%c0_7, %c0_8] : memref<16x1xf32, #tpu.memory_space<vmem>>, vector<16x1xf32>
    %6 = vector.broadcast %5 : vector<16x1xf32> to vector<16x256xf32>
    %7 = arith.addf %4, %6 : vector<16x256xf32>
    %cst_9 = arith.constant 0.000000e+00 : f32
    %8 = vector.broadcast %cst_9 : f32 to vector<16x256xf32>
    %9 = arith.maximumf %7, %8 : vector<16x256xf32>
    %c1_i32 = arith.constant 1 : i32
    %10 = tpu.dynamic_rotate %9 by %c1_i32 dim 1 : vector<16x256xf32>, i32 -> vector<16x256xf32>
    %11 = vector.broadcast %0 : vector<1x256xf32> to vector<16x256xf32>
    %12 = arith.mulf %10, %11 : vector<16x256xf32>
    %c255_i32 = arith.constant 255 : i32
    %13 = tpu.dynamic_rotate %9 by %c255_i32 dim 1 : vector<16x256xf32>, i32 -> vector<16x256xf32>
    %14 = vector.broadcast %1 : vector<1x256xf32> to vector<16x256xf32>
    %15 = arith.mulf %13, %14 : vector<16x256xf32>
    %16 = arith.maximumf %12, %15 : vector<16x256xf32>
    %17 = arith.maximumf %16, %9 : vector<16x256xf32>
    %c0_10 = arith.constant 0 : index
    %c0_11 = arith.constant 0 : index
    %18 = vector.load %arg5[%c0_10, %c0_11] : memref<8x16xf32, #tpu.memory_space<vmem>>, vector<8x16xf32>
    %cst_12 = arith.constant dense<0.000000e+00> : vector<8x256xf32>
    %19 = tpu.matmul %18, %17, %cst_12 {dimension_numbers = #tpu.dot_dimension_numbers<[1], [0], [0], [1], [0, 0, 1, 1], [], []>} : vector<8x16xf32>, vector<16x256xf32>, vector<8x256xf32> -> vector<8x256xf32>
    %c0_13 = arith.constant 0 : index
    %c0_14 = arith.constant 0 : index
    %20 = vector.load %arg6[%c0_13, %c0_14] : memref<8x1xf32, #tpu.memory_space<vmem>>, vector<8x1xf32>
    %21 = vector.broadcast %20 : vector<8x1xf32> to vector<8x256xf32>
    %22 = arith.addf %19, %21 : vector<8x256xf32>
    %cst_15 = arith.constant 0.000000e+00 : f32
    %23 = vector.broadcast %cst_15 : f32 to vector<8x256xf32>
    %24 = arith.maximumf %22, %23 : vector<8x256xf32>
    %c1_i32_16 = arith.constant 1 : i32
    %25 = tpu.dynamic_rotate %24 by %c1_i32_16 dim 1 : vector<8x256xf32>, i32 -> vector<8x256xf32>
    %26 = vector.broadcast %0 : vector<1x256xf32> to vector<8x256xf32>
    %27 = arith.mulf %25, %26 : vector<8x256xf32>
    %c255_i32_17 = arith.constant 255 : i32
    %28 = tpu.dynamic_rotate %24 by %c255_i32_17 dim 1 : vector<8x256xf32>, i32 -> vector<8x256xf32>
    %29 = vector.broadcast %1 : vector<1x256xf32> to vector<8x256xf32>
    %30 = arith.mulf %28, %29 : vector<8x256xf32>
    %c0_18 = arith.constant 0 : index
    %c0_19 = arith.constant 0 : index
    %c0_20 = arith.constant 0 : index
    %31 = vector.load %arg7[%c0_18, %c0_19, %c0_20] : memref<3x8x8xf32, #tpu.memory_space<vmem>>, vector<1x8x8xf32>
    %32 = vector.shape_cast %31 : vector<1x8x8xf32> to vector<8x8xf32>
    %cst_21 = arith.constant dense<0.000000e+00> : vector<8x256xf32>
    %33 = tpu.matmul %32, %27, %cst_21 {dimension_numbers = #tpu.dot_dimension_numbers<[1], [0], [0], [1], [0, 0, 1, 1], [], []>} : vector<8x8xf32>, vector<8x256xf32>, vector<8x256xf32> -> vector<8x256xf32>
    %c1 = arith.constant 1 : index
    %c0_22 = arith.constant 0 : index
    %c0_23 = arith.constant 0 : index
    %34 = vector.load %arg7[%c1, %c0_22, %c0_23] : memref<3x8x8xf32, #tpu.memory_space<vmem>>, vector<1x8x8xf32>
    %35 = vector.shape_cast %34 : vector<1x8x8xf32> to vector<8x8xf32>
    %cst_24 = arith.constant dense<0.000000e+00> : vector<8x256xf32>
    %36 = tpu.matmul %35, %24, %cst_24 {dimension_numbers = #tpu.dot_dimension_numbers<[1], [0], [0], [1], [0, 0, 1, 1], [], []>} : vector<8x8xf32>, vector<8x256xf32>, vector<8x256xf32> -> vector<8x256xf32>
    %37 = arith.addf %33, %36 : vector<8x256xf32>
    %c2 = arith.constant 2 : index
    %c0_25 = arith.constant 0 : index
    %c0_26 = arith.constant 0 : index
    %38 = vector.load %arg7[%c2, %c0_25, %c0_26] : memref<3x8x8xf32, #tpu.memory_space<vmem>>, vector<1x8x8xf32>
    %39 = vector.shape_cast %38 : vector<1x8x8xf32> to vector<8x8xf32>
    %cst_27 = arith.constant dense<0.000000e+00> : vector<8x256xf32>
    %40 = tpu.matmul %39, %30, %cst_27 {dimension_numbers = #tpu.dot_dimension_numbers<[1], [0], [0], [1], [0, 0, 1, 1], [], []>} : vector<8x8xf32>, vector<8x256xf32>, vector<8x256xf32> -> vector<8x256xf32>
    %41 = arith.addf %37, %40 : vector<8x256xf32>
    %c0_28 = arith.constant 0 : index
    %c0_29 = arith.constant 0 : index
    %42 = vector.load %arg8[%c0_28, %c0_29] : memref<8x1xf32, #tpu.memory_space<vmem>>, vector<8x1xf32>
    %43 = vector.broadcast %42 : vector<8x1xf32> to vector<8x256xf32>
    %44 = arith.addf %41, %43 : vector<8x256xf32>
    %cst_30 = arith.constant 0.000000e+00 : f32
    %45 = vector.broadcast %cst_30 : f32 to vector<8x256xf32>
    %46 = arith.maximumf %44, %45 : vector<8x256xf32>
    %c0_31 = arith.constant 0 : index
    %c0_32 = arith.constant 0 : index
    %47 = vector.load %arg9[%c0_31, %c0_32] : memref<16x8xf32, #tpu.memory_space<vmem>>, vector<16x8xf32>
    %cst_33 = arith.constant dense<0.000000e+00> : vector<16x256xf32>
    %48 = tpu.matmul %47, %46, %cst_33 {dimension_numbers = #tpu.dot_dimension_numbers<[1], [0], [0], [1], [0, 0, 1, 1], [], []>} : vector<16x8xf32>, vector<8x256xf32>, vector<16x256xf32> -> vector<16x256xf32>
    %c0_34 = arith.constant 0 : index
    %c0_35 = arith.constant 0 : index
    %49 = vector.load %arg10[%c0_34, %c0_35] : memref<16x1xf32, #tpu.memory_space<vmem>>, vector<16x1xf32>
    %50 = vector.broadcast %49 : vector<16x1xf32> to vector<16x256xf32>
    %51 = arith.addf %48, %50 : vector<16x256xf32>
    %52 = arith.addf %51, %17 : vector<16x256xf32>
    %cst_36 = arith.constant 0.000000e+00 : f32
    %53 = vector.broadcast %cst_36 : f32 to vector<16x256xf32>
    %54 = arith.maximumf %52, %53 : vector<16x256xf32>
    %c0_37 = arith.constant 0 : index
    %c0_38 = arith.constant 0 : index
    %55 = vector.load %arg11[%c0_37, %c0_38] : memref<8x16xf32, #tpu.memory_space<vmem>>, vector<8x16xf32>
    %cst_39 = arith.constant dense<0.000000e+00> : vector<8x256xf32>
    %56 = tpu.matmul %55, %54, %cst_39 {dimension_numbers = #tpu.dot_dimension_numbers<[1], [0], [0], [1], [0, 0, 1, 1], [], []>} : vector<8x16xf32>, vector<16x256xf32>, vector<8x256xf32> -> vector<8x256xf32>
    %c0_40 = arith.constant 0 : index
    %c0_41 = arith.constant 0 : index
    %57 = vector.load %arg12[%c0_40, %c0_41] : memref<8x1xf32, #tpu.memory_space<vmem>>, vector<8x1xf32>
    %58 = vector.broadcast %57 : vector<8x1xf32> to vector<8x256xf32>
    %59 = arith.addf %56, %58 : vector<8x256xf32>
    %cst_42 = arith.constant 0.000000e+00 : f32
    %60 = vector.broadcast %cst_42 : f32 to vector<8x256xf32>
    %61 = arith.maximumf %59, %60 : vector<8x256xf32>
    %c1_i32_43 = arith.constant 1 : i32
    %62 = tpu.dynamic_rotate %61 by %c1_i32_43 dim 1 : vector<8x256xf32>, i32 -> vector<8x256xf32>
    %63 = vector.broadcast %0 : vector<1x256xf32> to vector<8x256xf32>
    %64 = arith.mulf %62, %63 : vector<8x256xf32>
    %c255_i32_44 = arith.constant 255 : i32
    %65 = tpu.dynamic_rotate %61 by %c255_i32_44 dim 1 : vector<8x256xf32>, i32 -> vector<8x256xf32>
    %66 = vector.broadcast %1 : vector<1x256xf32> to vector<8x256xf32>
    %67 = arith.mulf %65, %66 : vector<8x256xf32>
    %c0_45 = arith.constant 0 : index
    %c0_46 = arith.constant 0 : index
    %c0_47 = arith.constant 0 : index
    %68 = vector.load %arg13[%c0_45, %c0_46, %c0_47] : memref<3x8x8xf32, #tpu.memory_space<vmem>>, vector<1x8x8xf32>
    %69 = vector.shape_cast %68 : vector<1x8x8xf32> to vector<8x8xf32>
    %cst_48 = arith.constant dense<0.000000e+00> : vector<8x256xf32>
    %70 = tpu.matmul %69, %64, %cst_48 {dimension_numbers = #tpu.dot_dimension_numbers<[1], [0], [0], [1], [0, 0, 1, 1], [], []>} : vector<8x8xf32>, vector<8x256xf32>, vector<8x256xf32> -> vector<8x256xf32>
    %c1_49 = arith.constant 1 : index
    %c0_50 = arith.constant 0 : index
    %c0_51 = arith.constant 0 : index
    %71 = vector.load %arg13[%c1_49, %c0_50, %c0_51] : memref<3x8x8xf32, #tpu.memory_space<vmem>>, vector<1x8x8xf32>
    %72 = vector.shape_cast %71 : vector<1x8x8xf32> to vector<8x8xf32>
    %cst_52 = arith.constant dense<0.000000e+00> : vector<8x256xf32>
    %73 = tpu.matmul %72, %61, %cst_52 {dimension_numbers = #tpu.dot_dimension_numbers<[1], [0], [0], [1], [0, 0, 1, 1], [], []>} : vector<8x8xf32>, vector<8x256xf32>, vector<8x256xf32> -> vector<8x256xf32>
    %74 = arith.addf %70, %73 : vector<8x256xf32>
    %c2_53 = arith.constant 2 : index
    %c0_54 = arith.constant 0 : index
    %c0_55 = arith.constant 0 : index
    %75 = vector.load %arg13[%c2_53, %c0_54, %c0_55] : memref<3x8x8xf32, #tpu.memory_space<vmem>>, vector<1x8x8xf32>
    %76 = vector.shape_cast %75 : vector<1x8x8xf32> to vector<8x8xf32>
    %cst_56 = arith.constant dense<0.000000e+00> : vector<8x256xf32>
    %77 = tpu.matmul %76, %67, %cst_56 {dimension_numbers = #tpu.dot_dimension_numbers<[1], [0], [0], [1], [0, 0, 1, 1], [], []>} : vector<8x8xf32>, vector<8x256xf32>, vector<8x256xf32> -> vector<8x256xf32>
    %78 = arith.addf %74, %77 : vector<8x256xf32>
    %c0_57 = arith.constant 0 : index
    %c0_58 = arith.constant 0 : index
    %79 = vector.load %arg14[%c0_57, %c0_58] : memref<8x1xf32, #tpu.memory_space<vmem>>, vector<8x1xf32>
    %80 = vector.broadcast %79 : vector<8x1xf32> to vector<8x256xf32>
    %81 = arith.addf %78, %80 : vector<8x256xf32>
    %cst_59 = arith.constant 0.000000e+00 : f32
    %82 = vector.broadcast %cst_59 : f32 to vector<8x256xf32>
    %83 = arith.maximumf %81, %82 : vector<8x256xf32>
    %c0_60 = arith.constant 0 : index
    %c0_61 = arith.constant 0 : index
    %84 = vector.load %arg15[%c0_60, %c0_61] : memref<16x8xf32, #tpu.memory_space<vmem>>, vector<16x8xf32>
    %cst_62 = arith.constant dense<0.000000e+00> : vector<16x256xf32>
    %85 = tpu.matmul %84, %83, %cst_62 {dimension_numbers = #tpu.dot_dimension_numbers<[1], [0], [0], [1], [0, 0, 1, 1], [], []>} : vector<16x8xf32>, vector<8x256xf32>, vector<16x256xf32> -> vector<16x256xf32>
    %c0_63 = arith.constant 0 : index
    %c0_64 = arith.constant 0 : index
    %86 = vector.load %arg16[%c0_63, %c0_64] : memref<16x1xf32, #tpu.memory_space<vmem>>, vector<16x1xf32>
    %87 = vector.broadcast %86 : vector<16x1xf32> to vector<16x256xf32>
    %88 = arith.addf %85, %87 : vector<16x256xf32>
    %89 = arith.addf %88, %54 : vector<16x256xf32>
    %cst_65 = arith.constant 0.000000e+00 : f32
    %90 = vector.broadcast %cst_65 : f32 to vector<16x256xf32>
    %91 = arith.maximumf %89, %90 : vector<16x256xf32>
    %c0_66 = arith.constant 0 : index
    %c0_67 = arith.constant 0 : index
    %c0_68 = arith.constant 0 : index
    %92 = vector.load %arg17[%c0_66, %c0_67, %c0_68] : memref<3x16x256xf32, #tpu.memory_space<vmem>>, vector<1x16x256xf32>
    %93 = vector.shape_cast %92 : vector<1x16x256xf32> to vector<16x256xf32>
    %94 = arith.mulf %91, %93 : vector<16x256xf32>
    %cst_69 = arith.constant dense<0.000000e+00> : vector<256xf32>
    %95 = vector.multi_reduction <add>, %94, %cst_69 [0] : vector<16x256xf32> to vector<256xf32>
    %96 = vector.shape_cast %95 : vector<256xf32> to vector<1x256xf32>
    %c1_70 = arith.constant 1 : index
    %c0_71 = arith.constant 0 : index
    %c0_72 = arith.constant 0 : index
    %97 = vector.load %arg17[%c1_70, %c0_71, %c0_72] : memref<3x16x256xf32, #tpu.memory_space<vmem>>, vector<1x16x256xf32>
    %98 = vector.shape_cast %97 : vector<1x16x256xf32> to vector<16x256xf32>
    %99 = arith.mulf %91, %98 : vector<16x256xf32>
    %cst_73 = arith.constant dense<0.000000e+00> : vector<256xf32>
    %100 = vector.multi_reduction <add>, %99, %cst_73 [0] : vector<16x256xf32> to vector<256xf32>
    %101 = vector.shape_cast %100 : vector<256xf32> to vector<1x256xf32>
    %c2_74 = arith.constant 2 : index
    %c0_75 = arith.constant 0 : index
    %c0_76 = arith.constant 0 : index
    %102 = vector.load %arg17[%c2_74, %c0_75, %c0_76] : memref<3x16x256xf32, #tpu.memory_space<vmem>>, vector<1x16x256xf32>
    %103 = vector.shape_cast %102 : vector<1x16x256xf32> to vector<16x256xf32>
    %104 = arith.mulf %91, %103 : vector<16x256xf32>
    %cst_77 = arith.constant dense<0.000000e+00> : vector<256xf32>
    %105 = vector.multi_reduction <add>, %104, %cst_77 [0] : vector<16x256xf32> to vector<256xf32>
    %106 = vector.shape_cast %105 : vector<256xf32> to vector<1x256xf32>
    %107 = tpu.concatenate %96, %101, %106 in 0 : vector<1x256xf32>, vector<1x256xf32>, vector<1x256xf32> -> vector<3x256xf32>
    %108 = vector.extract_strided_slice %107 {offsets = [0, 0], sizes = [3, 128], strides = [1, 1]} : vector<3x256xf32> to vector<3x128xf32>
    %cst_78 = arith.constant dense<0.000000e+00> : vector<3xf32>
    %109 = vector.multi_reduction <add>, %108, %cst_78 [1] : vector<3x128xf32> to vector<3xf32>
    %110 = vector.shape_cast %109 : vector<3xf32> to vector<3x1xf32>
    %c0_79 = arith.constant 0 : index
    %c0_80 = arith.constant 0 : index
    %111 = vector.load %arg18[%c0_79, %c0_80] : memref<3x1xf32, #tpu.memory_space<vmem>>, vector<3x1xf32>
    %112 = arith.addf %110, %111 : vector<3x1xf32>
    %cst_81 = arith.constant dense<0xFF800000> : vector<1xf32>
    %113 = vector.multi_reduction <maximumf>, %112, %cst_81 [0] : vector<3x1xf32> to vector<1xf32>
    %114 = vector.shape_cast %113 : vector<1xf32> to vector<1x1xf32>
    %115 = vector.broadcast %114 : vector<1x1xf32> to vector<3x1xf32>
    %116 = arith.subf %112, %115 : vector<3x1xf32>
    %117 = math.exp %116 : vector<3x1xf32>
    %cst_82 = arith.constant dense<0.000000e+00> : vector<1xf32>
    %118 = vector.multi_reduction <add>, %117, %cst_82 [0] : vector<3x1xf32> to vector<1xf32>
    %119 = vector.shape_cast %118 : vector<1xf32> to vector<1x1xf32>
    %120 = math.log %119 : vector<1x1xf32>
    %121 = arith.addf %114, %120 : vector<1x1xf32>
    %122 = vector.broadcast %121 : vector<1x1xf32> to vector<3x1xf32>
    %123 = arith.subf %112, %122 : vector<3x1xf32>
    %c0_83 = arith.constant 0 : index
    %c0_84 = arith.constant 0 : index
    %124 = vector.load %arg19[%c0_83, %c0_84] : memref<3x2xf32, #tpu.memory_space<vmem>>, vector<3x1xf32>
    tpu.vector_store %arg19[%c0_83, %c0_84], %123 {strides = array<i32>} : memref<3x2xf32, #tpu.memory_space<vmem>>, vector<3x1xf32>,
    %125 = vector.extract_strided_slice %107 {offsets = [0, 128], sizes = [3, 128], strides = [1, 1]} : vector<3x256xf32> to vector<3x128xf32>
    %cst_85 = arith.constant dense<0.000000e+00> : vector<3xf32>
    %126 = vector.multi_reduction <add>, %125, %cst_85 [1] : vector<3x128xf32> to vector<3xf32>
    %127 = vector.shape_cast %126 : vector<3xf32> to vector<3x1xf32>
    %c0_86 = arith.constant 0 : index
    %c0_87 = arith.constant 0 : index
    %128 = vector.load %arg18[%c0_86, %c0_87] : memref<3x1xf32, #tpu.memory_space<vmem>>, vector<3x1xf32>
    %129 = arith.addf %127, %128 : vector<3x1xf32>
    %cst_88 = arith.constant dense<0xFF800000> : vector<1xf32>
    %130 = vector.multi_reduction <maximumf>, %129, %cst_88 [0] : vector<3x1xf32> to vector<1xf32>
    %131 = vector.shape_cast %130 : vector<1xf32> to vector<1x1xf32>
    %132 = vector.broadcast %131 : vector<1x1xf32> to vector<3x1xf32>
    %133 = arith.subf %129, %132 : vector<3x1xf32>
    %134 = math.exp %133 : vector<3x1xf32>
    %cst_89 = arith.constant dense<0.000000e+00> : vector<1xf32>
    %135 = vector.multi_reduction <add>, %134, %cst_89 [0] : vector<3x1xf32> to vector<1xf32>
    %136 = vector.shape_cast %135 : vector<1xf32> to vector<1x1xf32>
    %137 = math.log %136 : vector<1x1xf32>
    %138 = arith.addf %131, %137 : vector<1x1xf32>
    %139 = vector.broadcast %138 : vector<1x1xf32> to vector<3x1xf32>
    %140 = arith.subf %129, %139 : vector<3x1xf32>
    %c0_90 = arith.constant 0 : index
    %c1_91 = arith.constant 1 : index
    %141 = vector.load %arg19[%c0_90, %c1_91] : memref<3x2xf32, #tpu.memory_space<vmem>>, vector<3x1xf32>
    tpu.vector_store %arg19[%c0_90, %c1_91], %140 {strides = array<i32>} : memref<3x2xf32, #tpu.memory_space<vmem>>, vector<3x1xf32>,
    return
  }
}

</mosaic_0001>

<llo_original>
// kernel: resnet_forward.1
$region0: #{resnet_forward.1}
  #allocation0 [shape = 'u32[]', space=smem, size = 0x4, offset = 0x4, fixed_abs, tag = 'smem constant byte address 0x4 - core index']
  #allocation1 [shape = 'u32[144,128]{1,0:T(1,128)}', space=vmem, size = 0x12000, scoped, tag = 'internal scratch']
  %s0 = inlined_call_operand.vmem [shape: f32[5,256], index: 0, kind: input, shape index: {}]
  %s1 = inlined_call_operand.vmem [shape: f32[16,5], index: 1, kind: input, shape index: {}]
  %s2 = inlined_call_operand.vmem [shape: f32[16,1], index: 2, kind: input, shape index: {}]
  %s3 = inlined_call_operand.vmem [shape: f32[1,256], index: 3, kind: input, shape index: {}]
  %s4 = inlined_call_operand.vmem [shape: f32[1,256], index: 4, kind: input, shape index: {}]
  %s5 = inlined_call_operand.vmem [shape: f32[8,16], index: 5, kind: input, shape index: {}]
  %s6 = inlined_call_operand.vmem [shape: f32[8,1], index: 6, kind: input, shape index: {}]
  %s7 = inlined_call_operand.vmem [shape: f32[3,8,8], index: 7, kind: input, shape index: {}]
  %s8 = inlined_call_operand.vmem [shape: f32[8,1], index: 8, kind: input, shape index: {}]
  %s9 = inlined_call_operand.vmem [shape: f32[16,8], index: 9, kind: input, shape index: {}]
  %s10 = inlined_call_operand.vmem [shape: f32[16,1], index: 10, kind: input, shape index: {}]
  %s11 = inlined_call_operand.vmem [shape: f32[8,16], index: 11, kind: input, shape index: {}]
  %s12 = inlined_call_operand.vmem [shape: f32[8,1], index: 12, kind: input, shape index: {}]
  %s13 = inlined_call_operand.vmem [shape: f32[3,8,8], index: 13, kind: input, shape index: {}]
  %s14 = inlined_call_operand.vmem [shape: f32[8,1], index: 14, kind: input, shape index: {}]
  %s15 = inlined_call_operand.vmem [shape: f32[16,8], index: 15, kind: input, shape index: {}]
  %s16 = inlined_call_operand.vmem [shape: f32[16,1], index: 16, kind: input, shape index: {}]
  %s17 = inlined_call_operand.vmem [shape: f32[3,16,256], index: 17, kind: input, shape index: {}]
  %s18 = inlined_call_operand.vmem [shape: f32[3,1], index: 18, kind: input, shape index: {}]
  %s19 = inlined_call_operand.vmem [shape: f32[3,2], index: 19, kind: output, shape index: {}]
  %s20 = sld [smem:[#allocation0]]
  $region86: #{resnet_forward.1} parent=0
    _
  %s22 = ssub.s32 1, %s20
  %s23 = scalar_select 0, %s22, %s20
  // Predicated region
  $region2: #{resnet_forward.1} parent=0 // pred_check
    _
  $region3: #{resnet_forward.1} parent=0 // pred_check_branch
    %25 = sbr.rel (0) target = $region5
  $region4: #{resnet_forward.1} parent=0 // pred_region
    _
  $region5: #{resnet_forward.1} parent=0 // pred_fallthru
    _
  // Predicated region
  $region6: #{resnet_forward.1} parent=0 // pred_check
    _
  $region7: #{resnet_forward.1} parent=0 // pred_check_branch
    %27 = sbr.rel (0) target = $region9
  $region8: #{resnet_forward.1} parent=0 // pred_region
    _
  $region9: #{resnet_forward.1} parent=0 // pred_fallthru
    _
  // Predicated region
  $region10: #{resnet_forward.1} parent=0 // pred_check
    _
  $region11: #{resnet_forward.1} parent=0 // pred_check_branch
    %29 = sbr.rel (0) target = $region13
  $region12: #{resnet_forward.1} parent=0 // pred_region
    _
  $region13: #{resnet_forward.1} parent=0 // pred_fallthru
    _
  // Predicated region
  $region14: #{resnet_forward.1} parent=0 // pred_check
    _
  $region15: #{resnet_forward.1} parent=0 // pred_check_branch
    %31 = sbr.rel (0) target = $region17
  $region16: #{resnet_forward.1} parent=0 // pred_region
    _
  $region17: #{resnet_forward.1} parent=0 // pred_fallthru
    _
  // Predicated region
  $region18: #{resnet_forward.1} parent=0 // pred_check
    _
  $region19: #{resnet_forward.1} parent=0 // pred_check_branch
    %33 = sbr.rel (0) target = $region21
  $region20: #{resnet_forward.1} parent=0 // pred_region
    _
  $region21: #{resnet_forward.1} parent=0 // pred_fallthru
    _
  // Predicated region
  $region22: #{resnet_forward.1} parent=0 // pred_check
    _
  $region23: #{resnet_forward.1} parent=0 // pred_check_branch
    %35 = sbr.rel (0) target = $region25
  $region24: #{resnet_forward.1} parent=0 // pred_region
    _
  $region25: #{resnet_forward.1} parent=0 // pred_fallthru
    _
  // Predicated region
  $region26: #{resnet_forward.1} parent=0 // pred_check
    _
  $region27: #{resnet_forward.1} parent=0 // pred_check_branch
    %37 = sbr.rel (0) target = $region29
  $region28: #{resnet_forward.1} parent=0 // pred_region
    _
  $region29: #{resnet_forward.1} parent=0 // pred_fallthru
    _
  // Predicated region
  $region30: #{resnet_forward.1} parent=0 // pred_check
    _
  $region31: #{resnet_forward.1} parent=0 // pred_check_branch
    %39 = sbr.rel (0) target = $region33
  $region32: #{resnet_forward.1} parent=0 // pred_region
    _
  $region33: #{resnet_forward.1} parent=0 // pred_fallthru
    _
  // Predicated region
  $region34: #{resnet_forward.1} parent=0 // pred_check
    _
  $region35: #{resnet_forward.1} parent=0 // pred_check_branch
    %41 = sbr.rel (0) target = $region37
  $region36: #{resnet_forward.1} parent=0 // pred_region
    _
  $region37: #{resnet_forward.1} parent=0 // pred_fallthru
    _
  // Predicated region
  $region38: #{resnet_forward.1} parent=0 // pred_check
    _
  $region39: #{resnet_forward.1} parent=0 // pred_check_branch
    %43 = sbr.rel (0) target = $region41
  $region40: #{resnet_forward.1} parent=0 // pred_region
    _
  $region41: #{resnet_forward.1} parent=0 // pred_fallthru
    _
  // Predicated region
  $region42: #{resnet_forward.1} parent=0 // pred_check
    _
  $region43: #{resnet_forward.1} parent=0 // pred_check_branch
    %45 = sbr.rel (0) target = $region45
  $region44: #{resnet_forward.1} parent=0 // pred_region
    _
  $region45: #{resnet_forward.1} parent=0 // pred_fallthru
    _
  // Predicated region
  $region46: #{resnet_forward.1} parent=0 // pred_check
    _
  $region47: #{resnet_forward.1} parent=0 // pred_check_branch
    %47 = sbr.rel (0) target = $region49
  $region48: #{resnet_forward.1} parent=0 // pred_region
    _
  $region49: #{resnet_forward.1} parent=0 // pred_fallthru
    _
  // Predicated region
  $region50: #{resnet_forward.1} parent=0 // pred_check
    _
  $region51: #{resnet_forward.1} parent=0 // pred_check_branch
    %49 = sbr.rel (0) target = $region53
  $region52: #{resnet_forward.1} parent=0 // pred_region
    _
  $region53: #{resnet_forward.1} parent=0 // pred_fallthru
    _
  // Predicated region
  $region54: #{resnet_forward.1} parent=0 // pred_check
    _
  $region55: #{resnet_forward.1} parent=0 // pred_check_branch
    %51 = sbr.rel (0) target = $region57
  $region56: #{resnet_forward.1} parent=0 // pred_region
    _
  $region57: #{resnet_forward.1} parent=0 // pred_fallthru
    _
  // Predicated region
  $region58: #{resnet_forward.1} parent=0 // pred_check
    _
  $region59: #{resnet_forward.1} parent=0 // pred_check_branch
    %53 = sbr.rel (0) target = $region61
  $region60: #{resnet_forward.1} parent=0 // pred_region
    _
  $region61: #{resnet_forward.1} parent=0 // pred_fallthru
    _
  // Predicated region
  $region62: #{resnet_forward.1} parent=0 // pred_check
    _
  $region63: #{resnet_forward.1} parent=0 // pred_check_branch
    %55 = sbr.rel (0) target = $region65
  $region64: #{resnet_forward.1} parent=0 // pred_region
    _
  $region65: #{resnet_forward.1} parent=0 // pred_fallthru
    _
  // Predicated region
  $region66: #{resnet_forward.1} parent=0 // pred_check
    _
  $region67: #{resnet_forward.1} parent=0 // pred_check_branch
    %57 = sbr.rel (0) target = $region69
  $region68: #{resnet_forward.1} parent=0 // pred_region
    _
  $region69: #{resnet_forward.1} parent=0 // pred_fallthru
    _
  // Predicated region
  $region70: #{resnet_forward.1} parent=0 // pred_check
    _
  $region71: #{resnet_forward.1} parent=0 // pred_check_branch
    %59 = sbr.rel (0) target = $region73
  $region72: #{resnet_forward.1} parent=0 // pred_region
    _
  $region73: #{resnet_forward.1} parent=0 // pred_fallthru
    _
  // Predicated region
  $region74: #{resnet_forward.1} parent=0 // pred_check
    _
  $region75: #{resnet_forward.1} parent=0 // pred_check_branch
    %61 = sbr.rel (0) target = $region77
  $region76: #{resnet_forward.1} parent=0 // pred_region
    _
  $region77: #{resnet_forward.1} parent=0 // pred_fallthru
    _
  %v62 = vld [vmem:[%s3] sm:$0x3]
  %v63 = vld [vmem:[%s4] sm:$0x3]
  %v64 = vld [vmem:[%s1] sm:$0xff]
  %v65 = vld [vmem:[%s1 + $0x8] sm:$0xff]
  %v66 = vld [vmem:[%s0] sm:$0x1f]
  %v67 = vld [vmem:[%s0 + $0x8] sm:$0x1f]
  %v68 = vld [vmem:[%s2] sm:$0xff]
  %v69 = vld [vmem:[%s2 + $0x8] sm:$0xff]
  %71 = vset.pattern.permute.xlu0 0
  %72 = vperm.xlu0 %71, %v68
  %v73 = vpop.permute.xlu0 %72
  %76 = vset.pattern.permute.xlu0 0
  %77 = vperm.xlu0 %76, %v69
  %v78 = vpop.permute.xlu0 %77
  %vm80 = vcmask 39936
  %v82 = vsel %vm80, %v64, 0
  %v85 = vsel %vm80, %v65, 0
  %vm87 = vcmask 1044480
  %v89 = vsel %vm87, %v66, 0
  %v92 = vsel %vm87, %v67, 0
  %94 = vmatprep.subr.mxu0 %v92
  %95 = vmatpush1.msra.mxu0 %v89
  %96 = vmatprep.subr.mxu0 0.0
  %97 = vmatpush1.msra.mxu0 0.0
  %98 = vmatprep.subr.mxu0 0.0
  %99 = vmatpush1.msra.mxu0 0.0
  %100 = vmatprep.subr.mxu0 0.0
  %101 = vmatpush1.msra.mxu0 0.0
  %102 = vmatprep.subr.mxu0 0.0
  %103 = vmatpush1.msra.mxu0 0.0
  %104 = vmatprep.subr.mxu0 0.0
  %105 = vmatpush1.msra.mxu0 0.0
  %106 = vmatprep.subr.mxu0 0.0
  %107 = vmatpush1.msra.mxu0 0.0
  %108 = vmatprep.subr.mxu0 0.0
  %109 = vmatpush1.msra.mxu0 0.0
  %110 = vmatprep.subr.mxu0 0.0
  %111 = vmatpush1.msra.mxu0 0.0
  %112 = vmatprep.subr.mxu0 0.0
  %113 = vmatpush1.msra.mxu0 0.0
  %114 = vmatprep.subr.mxu0 0.0
  %115 = vmatpush1.msra.mxu0 0.0
  %116 = vmatprep.subr.mxu0 0.0
  %117 = vmatpush1.msra.mxu0 0.0
  %118 = vmatprep.subr.mxu0 0.0
  %119 = vmatpush1.msra.mxu0 0.0
  %120 = vmatprep.subr.mxu0 0.0
  %121 = vmatpush1.msra.mxu0 0.0
  %122 = vmatprep.subr.mxu0 0.0
  %123 = vmatpush1.msra.mxu0 0.0
  %124 = vmatprep.subr.mxu0 0.0
  %125 = vmatpush1.msra.mxu0 0.0
  %126 = vmatprep.subr.mxu0 0.0
  %127 = vmatpush1.msra.mxu0 0.0
  %128 = vmatprep.subr.mxu0 0.0
  %129 = vmatpush1.msra.mxu0 0.0
  %130 = vmatprep.subr.mxu0 0.0
  %131 = vmatpush1.msra.mxu0 0.0
  %132 = vmatprep.subr.mxu0 0.0
  %133 = vmatpush1.msra.mxu0 0.0
  %134 = vmatprep.subr.mxu0 0.0
  %135 = vmatpush1.msra.mxu0 0.0
  %136 = vmatprep.subr.mxu0 0.0
  %137 = vmatpush1.msra.mxu0 0.0
  %138 = vmatprep.subr.mxu0 0.0
  %139 = vmatpush1.msra.mxu0 0.0
  %140 = vmatprep.subr.mxu0 0.0
  %141 = vmatpush1.msra.mxu0 0.0
  %142 = vmatprep.subr.mxu0 0.0
  %143 = vmatpush1.msra.mxu0 0.0
  %144 = vmatprep.subr.mxu0 0.0
  %145 = vmatpush1.msra.mxu0 0.0
  %146 = vmatprep.subr.mxu0 0.0
  %147 = vmatpush1.msra.mxu0 0.0
  %148 = vmatprep.subr.mxu0 0.0
  %149 = vmatpush1.msra.mxu0 0.0
  %150 = vmatprep.subr.mxu0 0.0
  %151 = vmatpush1.msra.mxu0 0.0
  %152 = vmatprep.subr.mxu0 0.0
  %153 = vmatpush1.msra.mxu0 0.0
  %154 = vmatprep.subr.mxu0 0.0
  %155 = vmatpush1.msra.mxu0 0.0
  %156 = vmatprep.subr.mxu0 0.0
  %157 = vmatpush1.msra.mxu0 0.0
  %158 = vmatprep.mubr.f32.mxu0 0.0
  %159 = vmatmul.mubr.f32.gmra.mrb[0].mxu0 %v82
  %v160 = vpop.f32.mrb[0].mxu0
  %v161 = vadd.f32 %v73, %v160
  %v162 = vpop.f32.mrb[0].mxu0
  %v163 = vadd.f32 %v73, %v162
  %164 = vmatprep.mubr.f32.mxu0 0.0
  %165 = vmatmul.mubr.f32.gmra.mrb[0].mxu0 %v85
  %v166 = vpop.f32.mrb[0].mxu0
  %v167 = vadd.f32 %v78, %v166
  %v168 = vpop.f32.mrb[0].mxu0
  %v169 = vadd.f32 %v78, %v168
  %170 = vdwg.mxu0
  %v171 = vmax.f32 %v161, 0.0
  %v172 = vmax.f32 %v163, 0.0
  %v173 = vmax.f32 %v167, 0.0
  %v174 = vmax.f32 %v169, 0.0
  %175 = vrot.lane.b32.xlu0 %v171, 1
  %v176 = vpop.permute.xlu0 %175
  %177 = vrot.lane.b32.xlu0 %v173, 1
  %v178 = vpop.permute.xlu0 %177
  %179 = vrot.lane.b32.xlu0 %v172, 1
  %v180 = vpop.permute.xlu0 %179
  %181 = vrot.lane.b32.xlu0 %v174, 1
  %v182 = vpop.permute.xlu0 %181
  %v183 = vlaneseq
  %v184 = vand.u32 %v183, 127
  %vm185 = vcmp.lt.s32.totalorder %v184, 1
  %v186 = vsel %vm185, %v176, %v180
  %v187 = vsel %vm185, %v178, %v182
  %v188 = vsel %vm185, %v180, %v176
  %v189 = vsel %vm185, %v182, %v178
  %v191 = vlaneseq
  %v192 = vshrl.u32 %v191, 7
  %v193 = vsub.s32 0, %v192
  %v194 = vrot.slane %v62, %v193
  %v195 = vlaneseq
  %v196 = vshrl.u32 %v195, 7
  %v197 = vsub.s32 1, %v196
  %v198 = vrot.slane %v62, %v197
  %v201 = vmul.f32 %v188, %v194
  %v202 = vmul.f32 %v186, %v198
  %v203 = vmul.f32 %v189, %v194
  %v204 = vmul.f32 %v187, %v198
  %205 = vrot.lane.b32.xlu0 %v171, 127
  %v206 = vpop.permute.xlu0 %205
  %207 = vrot.lane.b32.xlu0 %v173, 127
  %v208 = vpop.permute.xlu0 %207
  %209 = vrot.lane.b32.xlu0 %v172, 127
  %v210 = vpop.permute.xlu0 %209
  %211 = vrot.lane.b32.xlu0 %v174, 127
  %v212 = vpop.permute.xlu0 %211
  %vm213 = vcmp.lt.s32.totalorder %v184, 127
  %v214 = vsel %vm213, %v206, %v210
  %v215 = vsel %vm213, %v208, %v212
  %v216 = vsel %vm213, %v210, %v206
  %v217 = vsel %vm213, %v212, %v208
  %v219 = vlaneseq
  %v220 = vshrl.u32 %v219, 7
  %v221 = vsub.s32 0, %v220
  %v222 = vrot.slane %v63, %v221
  %v223 = vlaneseq
  %v224 = vshrl.u32 %v223, 7
  %v225 = vsub.s32 1, %v224
  %v226 = vrot.slane %v63, %v225
  %v229 = vmul.f32 %v214, %v222
  %v230 = vmul.f32 %v216, %v226
  %v231 = vmul.f32 %v215, %v222
  %v232 = vmul.f32 %v217, %v226
  %v233 = vmax.f32 %v201, %v229
  %v234 = vmax.f32 %v202, %v230
  %v235 = vmax.f32 %v203, %v231
  %v236 = vmax.f32 %v204, %v232
  %v237 = vmax.f32 %v233, %v171
  %v238 = vmax.f32 %v234, %v172
  %v239 = vmax.f32 %v235, %v173
  %v240 = vmax.f32 %v236, %v174
  %v241 = vld [vmem:[%s5] sm:$0xff]
  %v242 = vld [vmem:[%s6] sm:$0xff]
  %244 = vset.pattern.permute.xlu0 0
  %245 = vperm.xlu0 %244, %v242
  %v246 = vpop.permute.xlu0 %245
  %vm248 = vcmask 130048
  %v250 = vsel %vm248, %v241, 0
  %252 = vmatprep.subr.mxu0 %v238
  %253 = vmatpush1.msra.mxu0 %v237
  %254 = vmatprep.subr.mxu0 %v240
  %255 = vmatpush1.msra.mxu0 %v239
  %256 = vmatprep.subr.mxu0 0.0
  %257 = vmatpush1.msra.mxu0 0.0
  %258 = vmatprep.subr.mxu0 0.0
  %259 = vmatpush1.msra.mxu0 0.0
  %260 = vmatprep.subr.mxu0 0.0
  %261 = vmatpush1.msra.mxu0 0.0
  %262 = vmatprep.subr.mxu0 0.0
  %263 = vmatpush1.msra.mxu0 0.0
  %264 = vmatprep.subr.mxu0 0.0
  %265 = vmatpush1.msra.mxu0 0.0
  %266 = vmatprep.subr.mxu0 0.0
  %267 = vmatpush1.msra.mxu0 0.0
  %268 = vmatprep.subr.mxu0 0.0
  %269 = vmatpush1.msra.mxu0 0.0
  %270 = vmatprep.subr.mxu0 0.0
  %271 = vmatpush1.msra.mxu0 0.0
  %272 = vmatprep.subr.mxu0 0.0
  %273 = vmatpush1.msra.mxu0 0.0
  %274 = vmatprep.subr.mxu0 0.0
  %275 = vmatpush1.msra.mxu0 0.0
  %276 = vmatprep.subr.mxu0 0.0
  %277 = vmatpush1.msra.mxu0 0.0
  %278 = vmatprep.subr.mxu0 0.0
  %279 = vmatpush1.msra.mxu0 0.0
  %280 = vmatprep.subr.mxu0 0.0
  %281 = vmatpush1.msra.mxu0 0.0
  %282 = vmatprep.subr.mxu0 0.0
  %283 = vmatpush1.msra.mxu0 0.0
  %284 = vmatprep.subr.mxu0 0.0
  %285 = vmatpush1.msra.mxu0 0.0
  %286 = vmatprep.subr.mxu0 0.0
  %287 = vmatpush1.msra.mxu0 0.0
  %288 = vmatprep.subr.mxu0 0.0
  %289 = vmatpush1.msra.mxu0 0.0
  %290 = vmatprep.subr.mxu0 0.0
  %291 = vmatpush1.msra.mxu0 0.0
  %292 = vmatprep.subr.mxu0 0.0
  %293 = vmatpush1.msra.mxu0 0.0
  %294 = vmatprep.subr.mxu0 0.0
  %295 = vmatpush1.msra.mxu0 0.0
  %296 = vmatprep.subr.mxu0 0.0
  %297 = vmatpush1.msra.mxu0 0.0
  %298 = vmatprep.subr.mxu0 0.0
  %299 = vmatpush1.msra.mxu0 0.0
  %300 = vmatprep.subr.mxu0 0.0
  %301 = vmatpush1.msra.mxu0 0.0
  %302 = vmatprep.subr.mxu0 0.0
  %303 = vmatpush1.msra.mxu0 0.0
  %304 = vmatprep.subr.mxu0 0.0
  %305 = vmatpush1.msra.mxu0 0.0
  %306 = vmatprep.subr.mxu0 0.0
  %307 = vmatpush1.msra.mxu0 0.0
  %308 = vmatprep.subr.mxu0 0.0
  %309 = vmatpush1.msra.mxu0 0.0
  %310 = vmatprep.subr.mxu0 0.0
  %311 = vmatpush1.msra.mxu0 0.0
  %312 = vmatprep.subr.mxu0 0.0
  %313 = vmatpush1.msra.mxu0 0.0
  %314 = vmatprep.subr.mxu0 0.0
  %315 = vmatpush1.msra.mxu0 0.0
  %316 = vmatprep.mubr.f32.mxu0 0.0
  %317 = vmatmul.mubr.f32.gmra.mrb[0].mxu0 %v250
  %v318 = vpop.f32.mrb[0].mxu0
  %v319 = vadd.f32 %v246, %v318
  %v320 = vpop.f32.mrb[0].mxu0
  %v321 = vadd.f32 %v246, %v320
  %322 = vdwg.mxu0
  %v323 = vmax.f32 %v319, 0.0
  %v324 = vmax.f32 %v321, 0.0
  %325 = vrot.lane.b32.xlu0 %v323, 1
  %v326 = vpop.permute.xlu0 %325
  %327 = vrot.lane.b32.xlu0 %v324, 1
  %v328 = vpop.permute.xlu0 %327
  %v329 = vsel %vm185, %v326, %v328
  %v330 = vsel %vm185, %v328, %v326
  %v331 = vmul.f32 %v330, %v194
  %v332 = vmul.f32 %v329, %v198
  %333 = vrot.lane.b32.xlu0 %v323, 127
  %v334 = vpop.permute.xlu0 %333
  %335 = vrot.lane.b32.xlu0 %v324, 127
  %v336 = vpop.permute.xlu0 %335
  %v337 = vsel %vm213, %v334, %v336
  %v338 = vsel %vm213, %v336, %v334
  %v339 = vmul.f32 %v337, %v222
  %v340 = vmul.f32 %v338, %v226
  %v341 = vld [vmem:[%s7] sm:$0xff]
  %s342 = scalar_lea.vmem %s7, 8
  %v343 = vld [vmem:[%s342] sm:$0xff]
  %vm344 = vcmask 64512
  %v346 = vsel %vm344, %v343, 0
  %348 = vmatprep.subr.mxu0 %v324
  %349 = vmatpush1.msra.mxu0 %v323
  %350 = vmatprep.subr.mxu0 0.0
  %351 = vmatpush1.msra.mxu0 0.0
  %352 = vmatprep.subr.mxu0 0.0
  %353 = vmatpush1.msra.mxu0 0.0
  %354 = vmatprep.subr.mxu0 0.0
  %355 = vmatpush1.msra.mxu0 0.0
  %356 = vmatprep.subr.mxu0 0.0
  %357 = vmatpush1.msra.mxu0 0.0
  %358 = vmatprep.subr.mxu0 0.0
  %359 = vmatpush1.msra.mxu0 0.0
  %360 = vmatprep.subr.mxu0 0.0
  %361 = vmatpush1.msra.mxu0 0.0
  %362 = vmatprep.subr.mxu0 0.0
  %363 = vmatpush1.msra.mxu0 0.0
  %364 = vmatprep.subr.mxu0 0.0
  %365 = vmatpush1.msra.mxu0 0.0
  %366 = vmatprep.subr.mxu0 0.0
  %367 = vmatpush1.msra.mxu0 0.0
  %368 = vmatprep.subr.mxu0 0.0
  %369 = vmatpush1.msra.mxu0 0.0
  %370 = vmatprep.subr.mxu0 0.0
  %371 = vmatpush1.msra.mxu0 0.0
  %372 = vmatprep.subr.mxu0 0.0
  %373 = vmatpush1.msra.mxu0 0.0
  %374 = vmatprep.subr.mxu0 0.0
  %375 = vmatpush1.msra.mxu0 0.0
  %376 = vmatprep.subr.mxu0 0.0
  %377 = vmatpush1.msra.mxu0 0.0
  %378 = vmatprep.subr.mxu0 0.0
  %379 = vmatpush1.msra.mxu0 0.0
  %380 = vmatprep.subr.mxu0 0.0
  %381 = vmatpush1.msra.mxu0 0.0
  %382 = vmatprep.subr.mxu0 0.0
  %383 = vmatpush1.msra.mxu0 0.0
  %384 = vmatprep.subr.mxu0 0.0
  %385 = vmatpush1.msra.mxu0 0.0
  %386 = vmatprep.subr.mxu0 0.0
  %387 = vmatpush1.msra.mxu0 0.0
  %388 = vmatprep.subr.mxu0 0.0
  %389 = vmatpush1.msra.mxu0 0.0
  %390 = vmatprep.subr.mxu0 0.0
  %391 = vmatpush1.msra.mxu0 0.0
  %392 = vmatprep.subr.mxu0 0.0
  %393 = vmatpush1.msra.mxu0 0.0
  %394 = vmatprep.subr.mxu0 0.0
  %395 = vmatpush1.msra.mxu0 0.0
  %396 = vmatprep.subr.mxu0 0.0
  %397 = vmatpush1.msra.mxu0 0.0
  %398 = vmatprep.subr.mxu0 0.0
  %399 = vmatpush1.msra.mxu0 0.0
  %400 = vmatprep.subr.mxu0 0.0
  %401 = vmatpush1.msra.mxu0 0.0
  %402 = vmatprep.subr.mxu0 0.0
  %403 = vmatpush1.msra.mxu0 0.0
  %404 = vmatprep.subr.mxu0 0.0
  %405 = vmatpush1.msra.mxu0 0.0
  %406 = vmatprep.subr.mxu0 0.0
  %407 = vmatpush1.msra.mxu0 0.0
  %408 = vmatprep.subr.mxu0 0.0
  %409 = vmatpush1.msra.mxu0 0.0
  %410 = vmatprep.subr.mxu0 0.0
  %411 = vmatpush1.msra.mxu0 0.0
  %412 = vmatprep.mubr.f32.mxu0 0.0
  %413 = vmatmul.mubr.f32.gmra.mrb[0].mxu0 %v346
  %v414 = vpop.f32.mrb[0].mxu0
  %v415 = vadd.f32 0.0, %v414
  %v416 = vpop.f32.mrb[0].mxu0
  %v417 = vadd.f32 0.0, %v416
  %418 = vdwg.mxu0
  %v420 = vsel %vm344, %v341, 0
  %422 = vmatprep.subr.mxu0 %v332
  %423 = vmatpush1.msra.mxu0 %v331
  %424 = vmatprep.subr.mxu0 0.0
  %425 = vmatpush1.msra.mxu0 0.0
  %426 = vmatprep.subr.mxu0 0.0
  %427 = vmatpush1.msra.mxu0 0.0
  %428 = vmatprep.subr.mxu0 0.0
  %429 = vmatpush1.msra.mxu0 0.0
  %430 = vmatprep.subr.mxu0 0.0
  %431 = vmatpush1.msra.mxu0 0.0
  %432 = vmatprep.subr.mxu0 0.0
  %433 = vmatpush1.msra.mxu0 0.0
  %434 = vmatprep.subr.mxu0 0.0
  %435 = vmatpush1.msra.mxu0 0.0
  %436 = vmatprep.subr.mxu0 0.0
  %437 = vmatpush1.msra.mxu0 0.0
  %438 = vmatprep.subr.mxu0 0.0
  %439 = vmatpush1.msra.mxu0 0.0
  %440 = vmatprep.subr.mxu0 0.0
  %441 = vmatpush1.msra.mxu0 0.0
  %442 = vmatprep.subr.mxu0 0.0
  %443 = vmatpush1.msra.mxu0 0.0
  %444 = vmatprep.subr.mxu0 0.0
  %445 = vmatpush1.msra.mxu0 0.0
  %446 = vmatprep.subr.mxu0 0.0
  %447 = vmatpush1.msra.mxu0 0.0
  %448 = vmatprep.subr.mxu0 0.0
  %449 = vmatpush1.msra.mxu0 0.0
  %450 = vmatprep.subr.mxu0 0.0
  %451 = vmatpush1.msra.mxu0 0.0
  %452 = vmatprep.subr.mxu0 0.0
  %453 = vmatpush1.msra.mxu0 0.0
  %454 = vmatprep.subr.mxu0 0.0
  %455 = vmatpush1.msra.mxu0 0.0
  %456 = vmatprep.subr.mxu0 0.0
  %457 = vmatpush1.msra.mxu0 0.0
  %458 = vmatprep.subr.mxu0 0.0
  %459 = vmatpush1.msra.mxu0 0.0
  %460 = vmatprep.subr.mxu0 0.0
  %461 = vmatpush1.msra.mxu0 0.0
  %462 = vmatprep.subr.mxu0 0.0
  %463 = vmatpush1.msra.mxu0 0.0
  %464 = vmatprep.subr.mxu0 0.0
  %465 = vmatpush1.msra.mxu0 0.0
  %466 = vmatprep.subr.mxu0 0.0
  %467 = vmatpush1.msra.mxu0 0.0
  %468 = vmatprep.subr.mxu0 0.0
  %469 = vmatpush1.msra.mxu0 0.0
  %470 = vmatprep.subr.mxu0 0.0
  %471 = vmatpush1.msra.mxu0 0.0
  %472 = vmatprep.subr.mxu0 0.0
  %473 = vmatpush1.msra.mxu0 0.0
  %474 = vmatprep.subr.mxu0 0.0
  %475 = vmatpush1.msra.mxu0 0.0
  %476 = vmatprep.subr.mxu0 0.0
  %477 = vmatpush1.msra.mxu0 0.0
  %478 = vmatprep.subr.mxu0 0.0
  %479 = vmatpush1.msra.mxu0 0.0
  %480 = vmatprep.subr.mxu0 0.0
  %481 = vmatpush1.msra.mxu0 0.0
  %482 = vmatprep.subr.mxu0 0.0
  %483 = vmatpush1.msra.mxu0 0.0
  %484 = vmatprep.subr.mxu0 0.0
  %485 = vmatpush1.msra.mxu0 0.0
  %486 = vmatprep.mubr.f32.mxu0 0.0
  %487 = vmatmul.mubr.f32.gmra.mrb[0].mxu0 %v420
  %v488 = vpop.f32.mrb[0].mxu0
  %v489 = vadd.f32 %v415, %v488
  %v490 = vpop.f32.mrb[0].mxu0
  %v491 = vadd.f32 %v417, %v490
  %492 = vdwg.mxu0
  %s493 = scalar_lea.vmem %s7, 16
  %v494 = vld [vmem:[%s493] sm:$0xff]
  %v496 = vsel %vm344, %v494, 0
  %498 = vmatprep.subr.mxu0 %v340
  %499 = vmatpush1.msra.mxu0 %v339
  %500 = vmatprep.subr.mxu0 0.0
  %501 = vmatpush1.msra.mxu0 0.0
  %502 = vmatprep.subr.mxu0 0.0
  %503 = vmatpush1.msra.mxu0 0.0
  %504 = vmatprep.subr.mxu0 0.0
  %505 = vmatpush1.msra.mxu0 0.0
  %506 = vmatprep.subr.mxu0 0.0
  %507 = vmatpush1.msra.mxu0 0.0
  %508 = vmatprep.subr.mxu0 0.0
  %509 = vmatpush1.msra.mxu0 0.0
  %510 = vmatprep.subr.mxu0 0.0
  %511 = vmatpush1.msra.mxu0 0.0
  %512 = vmatprep.subr.mxu0 0.0
  %513 = vmatpush1.msra.mxu0 0.0
  %514 = vmatprep.subr.mxu0 0.0
  %515 = vmatpush1.msra.mxu0 0.0
  %516 = vmatprep.subr.mxu0 0.0
  %517 = vmatpush1.msra.mxu0 0.0
  %518 = vmatprep.subr.mxu0 0.0
  %519 = vmatpush1.msra.mxu0 0.0
  %520 = vmatprep.subr.mxu0 0.0
  %521 = vmatpush1.msra.mxu0 0.0
  %522 = vmatprep.subr.mxu0 0.0
  %523 = vmatpush1.msra.mxu0 0.0
  %524 = vmatprep.subr.mxu0 0.0
  %525 = vmatpush1.msra.mxu0 0.0
  %526 = vmatprep.subr.mxu0 0.0
  %527 = vmatpush1.msra.mxu0 0.0
  %528 = vmatprep.subr.mxu0 0.0
  %529 = vmatpush1.msra.mxu0 0.0
  %530 = vmatprep.subr.mxu0 0.0
  %531 = vmatpush1.msra.mxu0 0.0
  %532 = vmatprep.subr.mxu0 0.0
  %533 = vmatpush1.msra.mxu0 0.0
  %534 = vmatprep.subr.mxu0 0.0
  %535 = vmatpush1.msra.mxu0 0.0
  %536 = vmatprep.subr.mxu0 0.0
  %537 = vmatpush1.msra.mxu0 0.0
  %538 = vmatprep.subr.mxu0 0.0
  %539 = vmatpush1.msra.mxu0 0.0
  %540 = vmatprep.subr.mxu0 0.0
  %541 = vmatpush1.msra.mxu0 0.0
  %542 = vmatprep.subr.mxu0 0.0
  %543 = vmatpush1.msra.mxu0 0.0
  %544 = vmatprep.subr.mxu0 0.0
  %545 = vmatpush1.msra.mxu0 0.0
  %546 = vmatprep.subr.mxu0 0.0
  %547 = vmatpush1.msra.mxu0 0.0
  %548 = vmatprep.subr.mxu0 0.0
  %549 = vmatpush1.msra.mxu0 0.0
  %550 = vmatprep.subr.mxu0 0.0
  %551 = vmatpush1.msra.mxu0 0.0
  %552 = vmatprep.subr.mxu0 0.0
  %553 = vmatpush1.msra.mxu0 0.0
  %554 = vmatprep.subr.mxu0 0.0
  %555 = vmatpush1.msra.mxu0 0.0
  %556 = vmatprep.subr.mxu0 0.0
  %557 = vmatpush1.msra.mxu0 0.0
  %558 = vmatprep.subr.mxu0 0.0
  %559 = vmatpush1.msra.mxu0 0.0
  %560 = vmatprep.subr.mxu0 0.0
  %561 = vmatpush1.msra.mxu0 0.0
  %562 = vmatprep.mubr.f32.mxu0 0.0
  %563 = vmatmul.mubr.f32.gmra.mrb[0].mxu0 %v496
  %v564 = vpop.f32.mrb[0].mxu0
  %v565 = vadd.f32 0.0, %v564
  %v566 = vpop.f32.mrb[0].mxu0
  %v567 = vadd.f32 0.0, %v566
  %568 = vdwg.mxu0
  %v569 = vadd.f32 %v489, %v565
  %v570 = vadd.f32 %v491, %v567
  %v571 = vld [vmem:[%s8] sm:$0xff]
  %573 = vset.pattern.permute.xlu0 0
  %574 = vperm.xlu0 %573, %v571
  %v575 = vpop.permute.xlu0 %574
  %v577 = vadd.f32 %v569, %v575
  %v578 = vadd.f32 %v570, %v575
  %v579 = vmax.f32 %v577, 0.0
  %v580 = vmax.f32 %v578, 0.0
  %v581 = vld [vmem:[%s9] sm:$0xff]
  %v582 = vld [vmem:[%s9 + $0x8] sm:$0xff]
  %v583 = vld [vmem:[%s10] sm:$0xff]
  %v584 = vld [vmem:[%s10 + $0x8] sm:$0xff]
  %586 = vset.pattern.permute.xlu0 0
  %587 = vperm.xlu0 %586, %v583
  %v588 = vpop.permute.xlu0 %587
  %591 = vset.pattern.permute.xlu0 0
  %592 = vperm.xlu0 %591, %v584
  %v593 = vpop.permute.xlu0 %592
  %v596 = vsel %vm344, %v581, 0
  %v599 = vsel %vm344, %v582, 0
  %601 = vmatprep.subr.mxu0 %v580
  %602 = vmatpush1.msra.mxu0 %v579
  %603 = vmatprep.subr.mxu0 0.0
  %604 = vmatpush1.msra.mxu0 0.0
  %605 = vmatprep.subr.mxu0 0.0
  %606 = vmatpush1.msra.mxu0 0.0
  %607 = vmatprep.subr.mxu0 0.0
  %608 = vmatpush1.msra.mxu0 0.0
  %609 = vmatprep.subr.mxu0 0.0
  %610 = vmatpush1.msra.mxu0 0.0
  %611 = vmatprep.subr.mxu0 0.0
  %612 = vmatpush1.msra.mxu0 0.0
  %613 = vmatprep.subr.mxu0 0.0
  %614 = vmatpush1.msra.mxu0 0.0
  %615 = vmatprep.subr.mxu0 0.0
  %616 = vmatpush1.msra.mxu0 0.0
  %617 = vmatprep.subr.mxu0 0.0
  %618 = vmatpush1.msra.mxu0 0.0
  %619 = vmatprep.subr.mxu0 0.0
  %620 = vmatpush1.msra.mxu0 0.0
  %621 = vmatprep.subr.mxu0 0.0
  %622 = vmatpush1.msra.mxu0 0.0
  %623 = vmatprep.subr.mxu0 0.0
  %624 = vmatpush1.msra.mxu0 0.0
  %625 = vmatprep.subr.mxu0 0.0
  %626 = vmatpush1.msra.mxu0 0.0
  %627 = vmatprep.subr.mxu0 0.0
  %628 = vmatpush1.msra.mxu0 0.0
  %629 = vmatprep.subr.mxu0 0.0
  %630 = vmatpush1.msra.mxu0 0.0
  %631 = vmatprep.subr.mxu0 0.0
  %632 = vmatpush1.msra.mxu0 0.0
  %633 = vmatprep.subr.mxu0 0.0
  %634 = vmatpush1.msra.mxu0 0.0
  %635 = vmatprep.subr.mxu0 0.0
  %636 = vmatpush1.msra.mxu0 0.0
  %637 = vmatprep.subr.mxu0 0.0
  %638 = vmatpush1.msra.mxu0 0.0
  %639 = vmatprep.subr.mxu0 0.0
  %640 = vmatpush1.msra.mxu0 0.0
  %641 = vmatprep.subr.mxu0 0.0
  %642 = vmatpush1.msra.mxu0 0.0
  %643 = vmatprep.subr.mxu0 0.0
  %644 = vmatpush1.msra.mxu0 0.0
  %645 = vmatprep.subr.mxu0 0.0
  %646 = vmatpush1.msra.mxu0 0.0
  %647 = vmatprep.subr.mxu0 0.0
  %648 = vmatpush1.msra.mxu0 0.0
  %649 = vmatprep.subr.mxu0 0.0
  %650 = vmatpush1.msra.mxu0 0.0
  %651 = vmatprep.subr.mxu0 0.0
  %652 = vmatpush1.msra.mxu0 0.0
  %653 = vmatprep.subr.mxu0 0.0
  %654 = vmatpush1.msra.mxu0 0.0
  %655 = vmatprep.subr.mxu0 0.0
  %656 = vmatpush1.msra.mxu0 0.0
  %657 = vmatprep.subr.mxu0 0.0
  %658 = vmatpush1.msra.mxu0 0.0
  %659 = vmatprep.subr.mxu0 0.0
  %660 = vmatpush1.msra.mxu0 0.0
  %661 = vmatprep.subr.mxu0 0.0
  %662 = vmatpush1.msra.mxu0 0.0
  %663 = vmatprep.subr.mxu0 0.0
  %664 = vmatpush1.msra.mxu0 0.0
  %665 = vmatprep.mubr.f32.mxu0 0.0
  %666 = vmatmul.mubr.f32.gmra.mrb[0].mxu0 %v596
  %v667 = vpop.f32.mrb[0].mxu0
  %v668 = vadd.f32 %v588, %v667
  %v669 = vpop.f32.mrb[0].mxu0
  %v670 = vadd.f32 %v588, %v669
  %671 = vmatprep.mubr.f32.mxu0 0.0
  %672 = vmatmul.mubr.f32.gmra.mrb[0].mxu0 %v599
  %v673 = vpop.f32.mrb[0].mxu0
  %v674 = vadd.f32 %v593, %v673
  %v675 = vpop.f32.mrb[0].mxu0
  %v676 = vadd.f32 %v593, %v675
  %677 = vdwg.mxu0
  %v678 = vadd.f32 %v668, %v237
  %v679 = vadd.f32 %v670, %v238
  %v680 = vadd.f32 %v674, %v239
  %v681 = vadd.f32 %v676, %v240
  %v682 = vmax.f32 %v678, 0.0
  %v683 = vmax.f32 %v679, 0.0
  %v684 = vmax.f32 %v680, 0.0
  %v685 = vmax.f32 %v681, 0.0
  %v686 = vld [vmem:[%s11] sm:$0xff]
  %v687 = vld [vmem:[%s12] sm:$0xff]
  %689 = vset.pattern.permute.xlu0 0
  %690 = vperm.xlu0 %689, %v687
  %v691 = vpop.permute.xlu0 %690
  %v694 = vsel %vm248, %v686, 0
  %696 = vmatprep.subr.mxu0 %v683
  %697 = vmatpush1.msra.mxu0 %v682
  %698 = vmatprep.subr.mxu0 %v685
  %699 = vmatpush1.msra.mxu0 %v684
  %700 = vmatprep.subr.mxu0 0.0
  %701 = vmatpush1.msra.mxu0 0.0
  %702 = vmatprep.subr.mxu0 0.0
  %703 = vmatpush1.msra.mxu0 0.0
  %704 = vmatprep.subr.mxu0 0.0
  %705 = vmatpush1.msra.mxu0 0.0
  %706 = vmatprep.subr.mxu0 0.0
  %707 = vmatpush1.msra.mxu0 0.0
  %708 = vmatprep.subr.mxu0 0.0
  %709 = vmatpush1.msra.mxu0 0.0
  %710 = vmatprep.subr.mxu0 0.0
  %711 = vmatpush1.msra.mxu0 0.0
  %712 = vmatprep.subr.mxu0 0.0
  %713 = vmatpush1.msra.mxu0 0.0
  %714 = vmatprep.subr.mxu0 0.0
  %715 = vmatpush1.msra.mxu0 0.0
  %716 = vmatprep.subr.mxu0 0.0
  %717 = vmatpush1.msra.mxu0 0.0
  %718 = vmatprep.subr.mxu0 0.0
  %719 = vmatpush1.msra.mxu0 0.0
  %720 = vmatprep.subr.mxu0 0.0
  %721 = vmatpush1.msra.mxu0 0.0
  %722 = vmatprep.subr.mxu0 0.0
  %723 = vmatpush1.msra.mxu0 0.0
  %724 = vmatprep.subr.mxu0 0.0
  %725 = vmatpush1.msra.mxu0 0.0
  %726 = vmatprep.subr.mxu0 0.0
  %727 = vmatpush1.msra.mxu0 0.0
  %728 = vmatprep.subr.mxu0 0.0
  %729 = vmatpush1.msra.mxu0 0.0
  %730 = vmatprep.subr.mxu0 0.0
  %731 = vmatpush1.msra.mxu0 0.0
  %732 = vmatprep.subr.mxu0 0.0
  %733 = vmatpush1.msra.mxu0 0.0
  %734 = vmatprep.subr.mxu0 0.0
  %735 = vmatpush1.msra.mxu0 0.0
  %736 = vmatprep.subr.mxu0 0.0
  %737 = vmatpush1.msra.mxu0 0.0
  %738 = vmatprep.subr.mxu0 0.0
  %739 = vmatpush1.msra.mxu0 0.0
  %740 = vmatprep.subr.mxu0 0.0
  %741 = vmatpush1.msra.mxu0 0.0
  %742 = vmatprep.subr.mxu0 0.0
  %743 = vmatpush1.msra.mxu0 0.0
  %744 = vmatprep.subr.mxu0 0.0
  %745 = vmatpush1.msra.mxu0 0.0
  %746 = vmatprep.subr.mxu0 0.0
  %747 = vmatpush1.msra.mxu0 0.0
  %748 = vmatprep.subr.mxu0 0.0
  %749 = vmatpush1.msra.mxu0 0.0
  %750 = vmatprep.subr.mxu0 0.0
  %751 = vmatpush1.msra.mxu0 0.0
  %752 = vmatprep.subr.mxu0 0.0
  %753 = vmatpush1.msra.mxu0 0.0
  %754 = vmatprep.subr.mxu0 0.0
  %755 = vmatpush1.msra.mxu0 0.0
  %756 = vmatprep.subr.mxu0 0.0
  %757 = vmatpush1.msra.mxu0 0.0
  %758 = vmatprep.subr.mxu0 0.0
  %759 = vmatpush1.msra.mxu0 0.0
  %760 = vmatprep.mubr.f32.mxu0 0.0
  %761 = vmatmul.mubr.f32.gmra.mrb[0].mxu0 %v694
  %v762 = vpop.f32.mrb[0].mxu0
  %v763 = vadd.f32 %v691, %v762
  %v764 = vpop.f32.mrb[0].mxu0
  %v765 = vadd.f32 %v691, %v764
  %766 = vdwg.mxu0
  %v767 = vmax.f32 %v763, 0.0
  %v768 = vmax.f32 %v765, 0.0
  %769 = vrot.lane.b32.xlu0 %v767, 1
  %v770 = vpop.permute.xlu0 %769
  %771 = vrot.lane.b32.xlu0 %v768, 1
  %v772 = vpop.permute.xlu0 %771
  %v773 = vsel %vm185, %v770, %v772
  %v774 = vsel %vm185, %v772, %v770
  %v775 = vmul.f32 %v774, %v194
  %v776 = vmul.f32 %v773, %v198
  %777 = vrot.lane.b32.xlu0 %v767, 127
  %v778 = vpop.permute.xlu0 %777
  %779 = vrot.lane.b32.xlu0 %v768, 127
  %v780 = vpop.permute.xlu0 %779
  %v781 = vsel %vm213, %v778, %v780
  %v782 = vsel %vm213, %v780, %v778
  %v783 = vmul.f32 %v781, %v222
  %v784 = vmul.f32 %v782, %v226
  %v785 = vld [vmem:[%s13] sm:$0xff]
  %s786 = scalar_lea.vmem %s13, 8
  %v787 = vld [vmem:[%s786] sm:$0xff]
  %v789 = vsel %vm344, %v787, 0
  %791 = vmatprep.subr.mxu0 %v768
  %792 = vmatpush1.msra.mxu0 %v767
  %793 = vmatprep.subr.mxu0 0.0
  %794 = vmatpush1.msra.mxu0 0.0
  %795 = vmatprep.subr.mxu0 0.0
  %796 = vmatpush1.msra.mxu0 0.0
  %797 = vmatprep.subr.mxu0 0.0
  %798 = vmatpush1.msra.mxu0 0.0
  %799 = vmatprep.subr.mxu0 0.0
  %800 = vmatpush1.msra.mxu0 0.0
  %801 = vmatprep.subr.mxu0 0.0
  %802 = vmatpush1.msra.mxu0 0.0
  %803 = vmatprep.subr.mxu0 0.0
  %804 = vmatpush1.msra.mxu0 0.0
  %805 = vmatprep.subr.mxu0 0.0
  %806 = vmatpush1.msra.mxu0 0.0
  %807 = vmatprep.subr.mxu0 0.0
  %808 = vmatpush1.msra.mxu0 0.0
  %809 = vmatprep.subr.mxu0 0.0
  %810 = vmatpush1.msra.mxu0 0.0
  %811 = vmatprep.subr.mxu0 0.0
  %812 = vmatpush1.msra.mxu0 0.0
  %813 = vmatprep.subr.mxu0 0.0
  %814 = vmatpush1.msra.mxu0 0.0
  %815 = vmatprep.subr.mxu0 0.0
  %816 = vmatpush1.msra.mxu0 0.0
  %817 = vmatprep.subr.mxu0 0.0
  %818 = vmatpush1.msra.mxu0 0.0
  %819 = vmatprep.subr.mxu0 0.0
  %820 = vmatpush1.msra.mxu0 0.0
  %821 = vmatprep.subr.mxu0 0.0
  %822 = vmatpush1.msra.mxu0 0.0
  %823 = vmatprep.subr.mxu0 0.0
  %824 = vmatpush1.msra.mxu0 0.0
  %825 = vmatprep.subr.mxu0 0.0
  %826 = vmatpush1.msra.mxu0 0.0
  %827 = vmatprep.subr.mxu0 0.0
  %828 = vmatpush1.msra.mxu0 0.0
  %829 = vmatprep.subr.mxu0 0.0
  %830 = vmatpush1.msra.mxu0 0.0
  %831 = vmatprep.subr.mxu0 0.0
  %832 = vmatpush1.msra.mxu0 0.0
  %833 = vmatprep.subr.mxu0 0.0
  %834 = vmatpush1.msra.mxu0 0.0
  %835 = vmatprep.subr.mxu0 0.0
  %836 = vmatpush1.msra.mxu0 0.0
  %837 = vmatprep.subr.mxu0 0.0
  %838 = vmatpush1.msra.mxu0 0.0
  %839 = vmatprep.subr.mxu0 0.0
  %840 = vmatpush1.msra.mxu0 0.0
  %841 = vmatprep.subr.mxu0 0.0
  %842 = vmatpush1.msra.mxu0 0.0
  %843 = vmatprep.subr.mxu0 0.0
  %844 = vmatpush1.msra.mxu0 0.0
  %845 = vmatprep.subr.mxu0 0.0
  %846 = vmatpush1.msra.mxu0 0.0
  %847 = vmatprep.subr.mxu0 0.0
  %848 = vmatpush1.msra.mxu0 0.0
  %849 = vmatprep.subr.mxu0 0.0
  %850 = vmatpush1.msra.mxu0 0.0
  %851 = vmatprep.subr.mxu0 0.0
  %852 = vmatpush1.msra.mxu0 0.0
  %853 = vmatprep.subr.mxu0 0.0
  %854 = vmatpush1.msra.mxu0 0.0
  %855 = vmatprep.mubr.f32.mxu0 0.0
  %856 = vmatmul.mubr.f32.gmra.mrb[0].mxu0 %v789
  %v857 = vpop.f32.mrb[0].mxu0
  %v858 = vadd.f32 0.0, %v857
  %v859 = vpop.f32.mrb[0].mxu0
  %v860 = vadd.f32 0.0, %v859
  %861 = vdwg.mxu0
  %v863 = vsel %vm344, %v785, 0
  %865 = vmatprep.subr.mxu0 %v776
  %866 = vmatpush1.msra.mxu0 %v775
  %867 = vmatprep.subr.mxu0 0.0
  %868 = vmatpush1.msra.mxu0 0.0
  %869 = vmatprep.subr.mxu0 0.0
  %870 = vmatpush1.msra.mxu0 0.0
  %871 = vmatprep.subr.mxu0 0.0
  %872 = vmatpush1.msra.mxu0 0.0
  %873 = vmatprep.subr.mxu0 0.0
  %874 = vmatpush1.msra.mxu0 0.0
  %875 = vmatprep.subr.mxu0 0.0
  %876 = vmatpush1.msra.mxu0 0.0
  %877 = vmatprep.subr.mxu0 0.0
  %878 = vmatpush1.msra.mxu0 0.0
  %879 = vmatprep.subr.mxu0 0.0
  %880 = vmatpush1.msra.mxu0 0.0
  %881 = vmatprep.subr.mxu0 0.0
  %882 = vmatpush1.msra.mxu0 0.0
  %883 = vmatprep.subr.mxu0 0.0
  %884 = vmatpush1.msra.mxu0 0.0
  %885 = vmatprep.subr.mxu0 0.0
  %886 = vmatpush1.msra.mxu0 0.0
  %887 = vmatprep.subr.mxu0 0.0
  %888 = vmatpush1.msra.mxu0 0.0
  %889 = vmatprep.subr.mxu0 0.0
  %890 = vmatpush1.msra.mxu0 0.0
  %891 = vmatprep.subr.mxu0 0.0
  %892 = vmatpush1.msra.mxu0 0.0
  %893 = vmatprep.subr.mxu0 0.0
  %894 = vmatpush1.msra.mxu0 0.0
  %895 = vmatprep.subr.mxu0 0.0
  %896 = vmatpush1.msra.mxu0 0.0
  %897 = vmatprep.subr.mxu0 0.0
  %898 = vmatpush1.msra.mxu0 0.0
  %899 = vmatprep.subr.mxu0 0.0
  %900 = vmatpush1.msra.mxu0 0.0
  %901 = vmatprep.subr.mxu0 0.0
  %902 = vmatpush1.msra.mxu0 0.0
  %903 = vmatprep.subr.mxu0 0.0
  %904 = vmatpush1.msra.mxu0 0.0
  %905 = vmatprep.subr.mxu0 0.0
  %906 = vmatpush1.msra.mxu0 0.0
  %907 = vmatprep.subr.mxu0 0.0
  %908 = vmatpush1.msra.mxu0 0.0
  %909 = vmatprep.subr.mxu0 0.0
  %910 = vmatpush1.msra.mxu0 0.0
  %911 = vmatprep.subr.mxu0 0.0
  %912 = vmatpush1.msra.mxu0 0.0
  %913 = vmatprep.subr.mxu0 0.0
  %914 = vmatpush1.msra.mxu0 0.0
  %915 = vmatprep.subr.mxu0 0.0
  %916 = vmatpush1.msra.mxu0 0.0
  %917 = vmatprep.subr.mxu0 0.0
  %918 = vmatpush1.msra.mxu0 0.0
  %919 = vmatprep.subr.mxu0 0.0
  %920 = vmatpush1.msra.mxu0 0.0
  %921 = vmatprep.subr.mxu0 0.0
  %922 = vmatpush1.msra.mxu0 0.0
  %923 = vmatprep.subr.mxu0 0.0
  %924 = vmatpush1.msra.mxu0 0.0
  %925 = vmatprep.subr.mxu0 0.0
  %926 = vmatpush1.msra.mxu0 0.0
  %927 = vmatprep.subr.mxu0 0.0
  %928 = vmatpush1.msra.mxu0 0.0
  %929 = vmatprep.mubr.f32.mxu0 0.0
  %930 = vmatmul.mubr.f32.gmra.mrb[0].mxu0 %v863
  %v931 = vpop.f32.mrb[0].mxu0
  %v932 = vadd.f32 %v858, %v931
  %v933 = vpop.f32.mrb[0].mxu0
  %v934 = vadd.f32 %v860, %v933
  %935 = vdwg.mxu0
  %s936 = scalar_lea.vmem %s13, 16
  %v937 = vld [vmem:[%s936] sm:$0xff]
  %v939 = vsel %vm344, %v937, 0
  %941 = vmatprep.subr.mxu0 %v784
  %942 = vmatpush1.msra.mxu0 %v783
  %943 = vmatprep.subr.mxu0 0.0
  %944 = vmatpush1.msra.mxu0 0.0
  %945 = vmatprep.subr.mxu0 0.0
  %946 = vmatpush1.msra.mxu0 0.0
  %947 = vmatprep.subr.mxu0 0.0
  %948 = vmatpush1.msra.mxu0 0.0
  %949 = vmatprep.subr.mxu0 0.0
  %950 = vmatpush1.msra.mxu0 0.0
  %951 = vmatprep.subr.mxu0 0.0
  %952 = vmatpush1.msra.mxu0 0.0
  %953 = vmatprep.subr.mxu0 0.0
  %954 = vmatpush1.msra.mxu0 0.0
  %955 = vmatprep.subr.mxu0 0.0
  %956 = vmatpush1.msra.mxu0 0.0
  %957 = vmatprep.subr.mxu0 0.0
  %958 = vmatpush1.msra.mxu0 0.0
  %959 = vmatprep.subr.mxu0 0.0
  %960 = vmatpush1.msra.mxu0 0.0
  %961 = vmatprep.subr.mxu0 0.0
  %962 = vmatpush1.msra.mxu0 0.0
  %963 = vmatprep.subr.mxu0 0.0
  %964 = vmatpush1.msra.mxu0 0.0
  %965 = vmatprep.subr.mxu0 0.0
  %966 = vmatpush1.msra.mxu0 0.0
  %967 = vmatprep.subr.mxu0 0.0
  %968 = vmatpush1.msra.mxu0 0.0
  %969 = vmatprep.subr.mxu0 0.0
  %970 = vmatpush1.msra.mxu0 0.0
  %971 = vmatprep.subr.mxu0 0.0
  %972 = vmatpush1.msra.mxu0 0.0
  %973 = vmatprep.subr.mxu0 0.0
  %974 = vmatpush1.msra.mxu0 0.0
  %975 = vmatprep.subr.mxu0 0.0
  %976 = vmatpush1.msra.mxu0 0.0
  %977 = vmatprep.subr.mxu0 0.0
  %978 = vmatpush1.msra.mxu0 0.0
  %979 = vmatprep.subr.mxu0 0.0
  %980 = vmatpush1.msra.mxu0 0.0
  %981 = vmatprep.subr.mxu0 0.0
  %982 = vmatpush1.msra.mxu0 0.0
  %983 = vmatprep.subr.mxu0 0.0
  %984 = vmatpush1.msra.mxu0 0.0
  %985 = vmatprep.subr.mxu0 0.0
  %986 = vmatpush1.msra.mxu0 0.0
  %987 = vmatprep.subr.mxu0 0.0
  %988 = vmatpush1.msra.mxu0 0.0
  %989 = vmatprep.subr.mxu0 0.0
  %990 = vmatpush1.msra.mxu0 0.0
  %991 = vmatprep.subr.mxu0 0.0
  %992 = vmatpush1.msra.mxu0 0.0
  %993 = vmatprep.subr.mxu0 0.0
  %994 = vmatpush1.msra.mxu0 0.0
  %995 = vmatprep.subr.mxu0 0.0
  %996 = vmatpush1.msra.mxu0 0.0
  %997 = vmatprep.subr.mxu0 0.0
  %998 = vmatpush1.msra.mxu0 0.0
  %999 = vmatprep.subr.mxu0 0.0
  %1000 = vmatpush1.msra.mxu0 0.0
  %1001 = vmatprep.subr.mxu0 0.0
  %1002 = vmatpush1.msra.mxu0 0.0
  %1003 = vmatprep.subr.mxu0 0.0
  %1004 = vmatpush1.msra.mxu0 0.0
  %1005 = vmatprep.mubr.f32.mxu0 0.0
  %1006 = vmatmul.mubr.f32.gmra.mrb[0].mxu0 %v939
  %v1007 = vpop.f32.mrb[0].mxu0
  %v1008 = vadd.f32 0.0, %v1007
  %v1009 = vpop.f32.mrb[0].mxu0
  %v1010 = vadd.f32 0.0, %v1009
  %1011 = vdwg.mxu0
  %v1012 = vadd.f32 %v932, %v1008
  %v1013 = vadd.f32 %v934, %v1010
  %v1014 = vld [vmem:[%s14] sm:$0xff]
  %1016 = vset.pattern.permute.xlu0 0
  %1017 = vperm.xlu0 %1016, %v1014
  %v1018 = vpop.permute.xlu0 %1017
  %v1020 = vadd.f32 %v1012, %v1018
  %v1021 = vadd.f32 %v1013, %v1018
  %v1022 = vmax.f32 %v1020, 0.0
  %v1023 = vmax.f32 %v1021, 0.0
  %v1024 = vld [vmem:[%s15] sm:$0xff]
  %v1025 = vld [vmem:[%s15 + $0x8] sm:$0xff]
  %v1026 = vld [vmem:[%s16] sm:$0xff]
  %v1027 = vld [vmem:[%s16 + $0x8] sm:$0xff]
  %1029 = vset.pattern.permute.xlu0 0
  %1030 = vperm.xlu0 %1029, %v1026
  %v1031 = vpop.permute.xlu0 %1030
  %1034 = vset.pattern.permute.xlu0 0
  %1035 = vperm.xlu0 %1034, %v1027
  %v1036 = vpop.permute.xlu0 %1035
  %v1039 = vsel %vm344, %v1024, 0
  %v1042 = vsel %vm344, %v1025, 0
  %1044 = vmatprep.subr.mxu0 %v1023
  %1045 = vmatpush1.msra.mxu0 %v1022
  %1046 = vmatprep.subr.mxu0 0.0
  %1047 = vmatpush1.msra.mxu0 0.0
  %1048 = vmatprep.subr.mxu0 0.0
  %1049 = vmatpush1.msra.mxu0 0.0
  %1050 = vmatprep.subr.mxu0 0.0
  %1051 = vmatpush1.msra.mxu0 0.0
  %1052 = vmatprep.subr.mxu0 0.0
  %1053 = vmatpush1.msra.mxu0 0.0
  %1054 = vmatprep.subr.mxu0 0.0
  %1055 = vmatpush1.msra.mxu0 0.0
  %1056 = vmatprep.subr.mxu0 0.0
  %1057 = vmatpush1.msra.mxu0 0.0
  %1058 = vmatprep.subr.mxu0 0.0
  %1059 = vmatpush1.msra.mxu0 0.0
  %1060 = vmatprep.subr.mxu0 0.0
  %1061 = vmatpush1.msra.mxu0 0.0
  %1062 = vmatprep.subr.mxu0 0.0
  %1063 = vmatpush1.msra.mxu0 0.0
  %1064 = vmatprep.subr.mxu0 0.0
  %1065 = vmatpush1.msra.mxu0 0.0
  %1066 = vmatprep.subr.mxu0 0.0
  %1067 = vmatpush1.msra.mxu0 0.0
  %1068 = vmatprep.subr.mxu0 0.0
  %1069 = vmatpush1.msra.mxu0 0.0
  %1070 = vmatprep.subr.mxu0 0.0
  %1071 = vmatpush1.msra.mxu0 0.0
  %1072 = vmatprep.subr.mxu0 0.0
  %1073 = vmatpush1.msra.mxu0 0.0
  %1074 = vmatprep.subr.mxu0 0.0
  %1075 = vmatpush1.msra.mxu0 0.0
  %1076 = vmatprep.subr.mxu0 0.0
  %1077 = vmatpush1.msra.mxu0 0.0
  %1078 = vmatprep.subr.mxu0 0.0
  %1079 = vmatpush1.msra.mxu0 0.0
  %1080 = vmatprep.subr.mxu0 0.0
  %1081 = vmatpush1.msra.mxu0 0.0
  %1082 = vmatprep.subr.mxu0 0.0
  %1083 = vmatpush1.msra.mxu0 0.0
  %1084 = vmatprep.subr.mxu0 0.0
  %1085 = vmatpush1.msra.mxu0 0.0
  %1086 = vmatprep.subr.mxu0 0.0
  %1087 = vmatpush1.msra.mxu0 0.0
  %1088 = vmatprep.subr.mxu0 0.0
  %1089 = vmatpush1.msra.mxu0 0.0
  %1090 = vmatprep.subr.mxu0 0.0
  %1091 = vmatpush1.msra.mxu0 0.0
  %1092 = vmatprep.subr.mxu0 0.0
  %1093 = vmatpush1.msra.mxu0 0.0
  %1094 = vmatprep.subr.mxu0 0.0
  %1095 = vmatpush1.msra.mxu0 0.0
  %1096 = vmatprep.subr.mxu0 0.0
  %1097 = vmatpush1.msra.mxu0 0.0
  %1098 = vmatprep.subr.mxu0 0.0
  %1099 = vmatpush1.msra.mxu0 0.0
  %1100 = vmatprep.subr.mxu0 0.0
  %1101 = vmatpush1.msra.mxu0 0.0
  %1102 = vmatprep.subr.mxu0 0.0
  %1103 = vmatpush1.msra.mxu0 0.0
  %1104 = vmatprep.subr.mxu0 0.0
  %1105 = vmatpush1.msra.mxu0 0.0
  %1106 = vmatprep.subr.mxu0 0.0
  %1107 = vmatpush1.msra.mxu0 0.0
  %1108 = vmatprep.mubr.f32.mxu0 0.0
  %1109 = vmatmul.mubr.f32.gmra.mrb[0].mxu0 %v1039
  %v1110 = vpop.f32.mrb[0].mxu0
  %v1111 = vadd.f32 %v1031, %v1110
  %v1112 = vpop.f32.mrb[0].mxu0
  %v1113 = vadd.f32 %v1031, %v1112
  %1114 = vmatprep.mubr.f32.mxu0 0.0
  %1115 = vmatmul.mubr.f32.gmra.mrb[0].mxu0 %v1042
  %v1116 = vpop.f32.mrb[0].mxu0
  %v1117 = vadd.f32 %v1036, %v1116
  %v1118 = vpop.f32.mrb[0].mxu0
  %v1119 = vadd.f32 %v1036, %v1118
  %1120 = vdwg.mxu0
  %v1121 = vadd.f32 %v1111, %v682
  %v1122 = vadd.f32 %v1113, %v683
  %v1123 = vadd.f32 %v1117, %v684
  %v1124 = vadd.f32 %v1119, %v685
  %v1125 = vmax.f32 %v1121, 0.0
  %v1126 = vmax.f32 %v1122, 0.0
  %v1127 = vmax.f32 %v1123, 0.0
  %v1128 = vmax.f32 %v1124, 0.0
  %v1129 = vld [vmem:[%s17] sm:$0xff]
  %v1130 = vld [vmem:[%s17 + $0x8] sm:$0xff]
  %v1131 = vld [vmem:[%s17 + $0x10] sm:$0xff]
  %v1132 = vld [vmem:[%s17 + $0x18] sm:$0xff]
  %v1133 = vmul.f32 %v1125, %v1129
  %v1134 = vmul.f32 %v1126, %v1130
  %v1135 = vmul.f32 %v1127, %v1131
  %v1136 = vmul.f32 %v1128, %v1132
  %v1137 = vadd.f32 %v1133, %v1135
  %v1138 = vrot.slane %v1137, 4
  %v1139 = vadd.f32 %v1137, %v1138
  %v1140 = vrot.slane %v1139, 2
  %v1141 = vadd.f32 %v1139, %v1140
  %v1142 = vrot.slane %v1141, 1
  %v1143 = vadd.f32 %v1141, %v1142
  %v1144 = vadd.f32 %v1134, %v1136
  %v1145 = vrot.slane %v1144, 4
  %v1146 = vadd.f32 %v1144, %v1145
  %v1147 = vrot.slane %v1146, 2
  %v1148 = vadd.f32 %v1146, %v1147
  %v1149 = vrot.slane %v1148, 1
  %v1150 = vadd.f32 %v1148, %v1149
  %s1151 = scalar_lea.vmem %s17, 32
  %v1152 = vld [vmem:[%s1151] sm:$0xff]
  %v1153 = vld [vmem:[%s1151 + $0x8] sm:$0xff]
  %v1154 = vld [vmem:[%s1151 + $0x10] sm:$0xff]
  %v1155 = vld [vmem:[%s1151 + $0x18] sm:$0xff]
  %v1156 = vmul.f32 %v1125, %v1152
  %v1157 = vmul.f32 %v1126, %v1153
  %v1158 = vmul.f32 %v1127, %v1154
  %v1159 = vmul.f32 %v1128, %v1155
  %v1160 = vadd.f32 %v1156, %v1158
  %v1161 = vrot.slane %v1160, 4
  %v1162 = vadd.f32 %v1160, %v1161
  %v1163 = vrot.slane %v1162, 2
  %v1164 = vadd.f32 %v1162, %v1163
  %v1165 = vrot.slane %v1164, 1
  %v1166 = vadd.f32 %v1164, %v1165
  %v1167 = vadd.f32 %v1157, %v1159
  %v1168 = vrot.slane %v1167, 4
  %v1169 = vadd.f32 %v1167, %v1168
  %v1170 = vrot.slane %v1169, 2
  %v1171 = vadd.f32 %v1169, %v1170
  %v1172 = vrot.slane %v1171, 1
  %v1173 = vadd.f32 %v1171, %v1172
  %s1174 = scalar_lea.vmem %s17, 64
  %v1175 = vld [vmem:[%s1174] sm:$0xff]
  %v1176 = vld [vmem:[%s1174 + $0x8] sm:$0xff]
  %v1177 = vld [vmem:[%s1174 + $0x10] sm:$0xff]
  %v1178 = vld [vmem:[%s1174 + $0x18] sm:$0xff]
  %v1179 = vmul.f32 %v1125, %v1175
  %v1180 = vmul.f32 %v1126, %v1176
  %v1181 = vmul.f32 %v1127, %v1177
  %v1182 = vmul.f32 %v1128, %v1178
  %v1183 = vadd.f32 %v1179, %v1181
  %v1184 = vrot.slane %v1183, 4
  %v1185 = vadd.f32 %v1183, %v1184
  %v1186 = vrot.slane %v1185, 2
  %v1187 = vadd.f32 %v1185, %v1186
  %v1188 = vrot.slane %v1187, 1
  %v1189 = vadd.f32 %v1187, %v1188
  %v1190 = vadd.f32 %v1180, %v1182
  %v1191 = vrot.slane %v1190, 4
  %v1192 = vadd.f32 %v1190, %v1191
  %v1193 = vrot.slane %v1192, 2
  %v1194 = vadd.f32 %v1192, %v1193
  %v1195 = vrot.slane %v1194, 1
  %v1196 = vadd.f32 %v1194, %v1195
  %vm1197 = vcmask 1040384
  %v1198 = vsel %vm1197, %v1143, %v1166
  %v1199 = vsel %vm1197, %v1150, %v1173
  %vm1200 = vcmask 1041408
  %v1201 = vsel %vm1200, %v1198, %v1189
  %v1202 = vsel %vm1200, %v1199, %v1196
  %vm1203 = vcmask 1042432
  %v1204 = vsel %vm1203, %v1201, 0.0
  %1205 = vadd.xlane.f32.xlu0 %v1204
  %v1206 = vpop.xlane.xlu0 %1205
  %v1207 = vld [vmem:[%s18] sm:$0x7]
  %v1208 = vadd.f32 %v1206, %v1207
  %vm1209 = vcmask 2048
  %v1210 = vsel %vm1209, %v1208, -inf
  %v1211 = vrot.slane %v1210, 4
  %v1212 = vmax.f32 %v1210, %v1211
  %v1213 = vrot.slane %v1212, 2
  %v1214 = vmax.f32 %v1212, %v1213
  %v1215 = vrot.slane %v1214, 1
  %v1216 = vmax.f32 %v1214, %v1215
  %v1217 = vsub.f32 %v1208, %v1216
  %v1218 = vmul.f32 %v1217, 1.442695
  %v1219 = vpow.pop %v1218
  %v1220 = vsel %vm1209, %v1219, 0.0
  %v1221 = vrot.slane %v1220, 4
  %v1222 = vadd.f32 %v1220, %v1221
  %v1223 = vrot.slane %v1222, 2
  %v1224 = vadd.f32 %v1222, %v1223
  %v1225 = vrot.slane %v1224, 1
  %v1226 = vadd.f32 %v1224, %v1225
  %v1227 = vlog2.pop %v1226
  %v1228 = vmul.f32 %v1227, 0.6931472
  %v1229 = vadd.f32 %v1216, %v1228
  %v1230 = vsub.f32 %v1208, %v1229
  %1231 = vst.msk [vmem:[%s19] sm:$0x7] %vm1209, %v1230
  %v1232 = vsel %vm1203, %v1202, 0.0
  %1233 = vadd.xlane.f32.xlu0 %v1232
  %v1234 = vpop.xlane.xlu0 %1233
  %v1235 = vld [vmem:[%s18] sm:$0x7]
  %v1236 = vadd.f32 %v1234, %v1235
  %v1237 = vsel %vm1209, %v1236, -inf
  %v1238 = vrot.slane %v1237, 4
  %v1239 = vmax.f32 %v1237, %v1238
  %v1240 = vrot.slane %v1239, 2
  %v1241 = vmax.f32 %v1239, %v1240
  %v1242 = vrot.slane %v1241, 1
  %v1243 = vmax.f32 %v1241, %v1242
  %v1244 = vsub.f32 %v1236, %v1243
  %v1245 = vmul.f32 %v1244, 1.442695
  %v1246 = vpow.pop %v1245
  %v1247 = vsel %vm1209, %v1246, 0.0
  %v1248 = vrot.slane %v1247, 4
  %v1249 = vadd.f32 %v1247, %v1248
  %v1250 = vrot.slane %v1249, 2
  %v1251 = vadd.f32 %v1249, %v1250
  %v1252 = vrot.slane %v1251, 1
  %v1253 = vadd.f32 %v1251, %v1252
  %v1254 = vlog2.pop %v1253
  %v1255 = vmul.f32 %v1254, 0.6931472
  %v1256 = vadd.f32 %v1243, %v1255
  %v1257 = vsub.f32 %v1236, %v1256
  %1259 = vrot.lane.b32.xlu0 %v1257, 1
  %v1260 = vpop.permute.xlu0 %1259
  %vm1262 = vcmask 10248
  %1263 = vst.msk [vmem:[%s19] sm:$0x7] %vm1262, %v1260
  // Predicated region
  $region78: #{resnet_forward.1} parent=0 // pred_check
    _
  $region79: #{resnet_forward.1} parent=0 // pred_check_branch
    %1265 = sbr.rel (0) target = $region81
  $region80: #{resnet_forward.1} parent=0 // pred_region
    _
  $region81: #{resnet_forward.1} parent=0 // pred_fallthru
    _
  // Predicated region
  $region82: #{resnet_forward.1} parent=0 // pred_check
    _
  $region83: #{resnet_forward.1} parent=0 // pred_check_branch
    %1267 = sbr.rel (0) target = $region85
  $region84: #{resnet_forward.1} parent=0 // pred_region
    _
  $region85: #{resnet_forward.1} parent=0 // pred_fallthru
    _

</llo_original>
